<compile_context>
chip_gen: v7x
topology: tpu7x:2x2x1
jax: 0.10.0
libtpu: 0.0.40
codegen_flags: <defaults>
</compile_context>

<pallas_src>
import functools

import jax
import jax.numpy as jnp
from jax import lax
from jax.experimental import pallas as pl
from jax.experimental.pallas import tpu as pltpu


def _round_up(a, m):
    return (a + m - 1) // m * m


def _ai_mlp_kernel(w1_ref, b1_ref, w2_ref, b2_ref, w3_ref, b3_ref, x_ref, o_ref):
    """One grid step processes a (5, n_rows, 128) feature-major batch block.

    Batch elements fill both the sublane and lane axes, every weight/bias is a
    single SMEM scalar, and an inner fori_loop walks small row-slabs so the
    whole layer chain stays in registers (no spills) for any block size.
    """
    n_rows = x_ref.shape[1]                    # static: rows per block (multiple of 8)
    slab = 16 if n_rows % 16 == 0 else 8       # rows (sublanes) per inner iteration

    def body(s, carry):
        r0 = pl.multiple_of(s * slab, slab)
        rows = pl.ds(r0, slab)

        # ---- load x slab: 5 dense (slab, 128) feature planes (upcast if bf16) --
        x = [x_ref[k, rows, :].astype(jnp.float32) for k in range(5)]

        # ---- layer 1: Linear(5, 8) + ReLU  (scalar-weight mul/add chains) ------
        h1 = []
        for j in range(8):
            a = x[0] * w1_ref[j, 0]
            for k in range(1, 5):
                a = a + x[k] * w1_ref[j, k]
            h1.append(jnp.maximum(a + b1_ref[j], 0.0))

        # ---- layer 2: Linear(8, 8) + ReLU ---------------------------------------
        h2 = []
        for j in range(8):
            a = h1[0] * w2_ref[j, 0]
            for k in range(1, 8):
                a = a + h1[k] * w2_ref[j, k]
            h2.append(jnp.maximum(a + b2_ref[j], 0.0))

        # ---- layer 3: Linear(8, 1) + sigmoid (exp + reciprocal on the EUP) -----
        z = h2[0] * w3_ref[0, 0]
        for k in range(1, 8):
            z = z + h2[k] * w3_ref[0, k]
        z = z + b3_ref[0]
        o = pl.reciprocal(1.0 + jnp.exp(-z), approx=True)
        o_ref[0, rows, :] = o.astype(o_ref.dtype)
        return carry

    lax.fori_loop(0, n_rows // slab, body, 0)


@functools.partial(jax.jit, static_argnames=("block_rows",))
def ai_forward_feature_major(xt, params, *, block_rows=256):
    """Fast path.  xt: feature-major input of shape (5, B) (f32 or bf16).

    Returns (B, 1) float32.  Padding is only to the block granularity
    (>= 1024 batch elems, <= ~12.5% + 1 block of dead columns for large B).
    """
    feat, batch = xt.shape
    assert feat == 5, "AI expects 5 input features"

    nb = -(-batch // 128)                                   # 128-lane groups
    # ~8+ grid steps on large batches (feeds both v7x TCs); rows multiple of 8.
    tbr = max(8, min(block_rows, _round_up(-(-nb // 8), 8)))
    nb_pad = _round_up(nb, tbr)
    b_pad = nb_pad * 128
    if b_pad != batch:
        xt = jnp.pad(xt, ((0, 0), (0, b_pad - batch)))
    x3 = xt.reshape(feat, nb_pad, 128)                      # free row-major reshape

    smem = pl.BlockSpec(memory_space=pltpu.MemorySpace.SMEM)
    out = pl.pallas_call(
        _ai_mlp_kernel,
        out_shape=jax.ShapeDtypeStruct((1, nb_pad, 128), jnp.float32),
        grid=(nb_pad // tbr,),
        in_specs=[smem, smem, smem, smem, smem, smem,               # params (scalars)
                  pl.BlockSpec((feat, tbr, 128), lambda i: (0, i, 0))],
        out_specs=pl.BlockSpec((1, tbr, 128), lambda i: (0, i, 0)),
        compiler_params=pltpu.CompilerParams(
            dimension_semantics=("parallel",),
        ),
    )(params["w1"], params["b1"], params["w2"], params["b2"],
      params["w3"], params["b3"], x3)

    return out.reshape(b_pad)[:batch].reshape(batch, 1)     # free reshapes + tiny slice


def ai_forward(x, params, *, block_rows=256):
    """PyTorch-layout compat path: x of shape (B, 5).

    NOTE: the transpose below is one extra HBM pass over x; for large batches
    feed `ai_forward_feature_major` directly (or fuse the transpose into the
    producer of x).
    """
    return ai_forward_feature_major(x.T, params, block_rows=block_rows)


def init_params(key):
    """Deterministic init mirroring nn.Linear defaults: U(-1/sqrt(fan_in), +)."""
    ks = jax.random.split(key, 6)

    def uniform(k, shape, fan_in):
        bound = 1.0 / jnp.sqrt(fan_in)
        return jax.random.uniform(k, shape, jnp.float32, -bound, bound)

    return {
        "w1": uniform(ks[0], (8, 5), 5.0),
        "b1": uniform(ks[1], (8,), 5.0),
        "w2": uniform(ks[2], (8, 8), 8.0),
        "b2": uniform(ks[3], (8,), 8.0),
        "w3": uniform(ks[4], (1, 8), 8.0),
        "b3": uniform(ks[5], (1,), 8.0),
    }


def ai_forward_ref(x, params):
    """Pure-JAX exact-f32 reference (elementwise + reduce, no MXU)."""
    h1 = jax.nn.relu((x[:, None, :] * params["w1"][None]).sum(-1) + params["b1"])
    h2 = jax.nn.relu((h1[:, None, :] * params["w2"][None]).sum(-1) + params["b2"])
    return jax.nn.sigmoid((h2[:, None, :] * params["w3"][None]).sum(-1) + params["b3"])


# TODO(synk): load_gene / merge_and_mutate depend on torch checkpoint files
# ('ai1.pt'/'ai2.pt') and host-side RNG mutation; not part of the forward hot
# path, so parameters are initialized deterministically in-script.

if __name__ == "__main__":
    key = jax.random.PRNGKey(0)
    pkey, xkey, xkey2 = jax.random.split(key, 3)
    params = init_params(pkey)

    # Small batch (module-sized) through both APIs.
    batch = 8
    x = jax.random.normal(xkey, (batch, 5), dtype=jnp.float32)
    out_fm = jax.block_until_ready(ai_forward_feature_major(x.T, params))
    out_bc = jax.block_until_ready(ai_forward(x, params))
    ref = ai_forward_ref(x, params)

    assert out_fm.shape == (batch, 1) and out_bc.shape == (batch, 1)
    # The only approximate op in the kernel is the EUP reciprocal in the sigmoid
    # (swap approx=False for bit-level exactness); 1e-3 comfortably covers it.
    assert jnp.allclose(out_fm, ref, atol=1e-3, rtol=1e-3), "mismatch vs reference"
    assert jnp.allclose(out_bc, out_fm), "compat path mismatch"

    # Larger batch: exercises 128-lane padding, multi-step grid and the slab loop.
    batch2 = 2500
    x2 = jax.random.normal(xkey2, (batch2, 5), dtype=jnp.float32)
    out2 = jax.block_until_ready(ai_forward_feature_major(x2.T, params))
    ref2 = ai_forward_ref(x2, params)
    assert out2.shape == (batch2, 1)
    assert jnp.allclose(out2, ref2, atol=1e-3, rtol=1e-3), "mismatch vs reference (large)"

    print("KERNEL_OK")
</pallas_src>

<mosaic_0001>
module attributes {stable_mosaic.version = 11 : i64} {
  func.func @_ai_mlp_kernel(%arg0: i32, %arg1: memref<8x5xf32, #tpu.memory_space<smem>>, %arg2: memref<8xf32, #tpu.memory_space<smem>>, %arg3: memref<8x8xf32, #tpu.memory_space<smem>>, %arg4: memref<8xf32, #tpu.memory_space<smem>>, %arg5: memref<1x8xf32, #tpu.memory_space<smem>>, %arg6: memref<1xf32, #tpu.memory_space<smem>>, %arg7: memref<5x8x128xf32, #tpu.memory_space<vmem>>, %arg8: memref<1x8x128xf32, #tpu.memory_space<vmem>>) attributes {dimension_semantics = [#tpu.dimension_semantics<parallel>], iteration_bounds = array<i64: 1>, scalar_prefetch = 0 : i64, scratch_operands = 0 : i64, tpu.core_type = #tpu.core_type<tc>, window_params = [{transform_indices = @transform_0, window_bounds = array<i64: 8, 5>}, {transform_indices = @transform_1, window_bounds = array<i64: 8>}, {transform_indices = @transform_2, window_bounds = array<i64: 8, 8>}, {transform_indices = @transform_3, window_bounds = array<i64: 8>}, {transform_indices = @transform_4, window_bounds = array<i64: 1, 8>}, {transform_indices = @transform_5, window_bounds = array<i64: 1>}, {transform_indices = @transform_6, window_bounds = array<i64: 5, 8, 128>}, {transform_indices = @transform_7, window_bounds = array<i64: 1, 8, 128>}]} {
    %c0_i32 = arith.constant 0 : i32
    %c8_i32 = arith.constant 8 : i32
    %0 = arith.muli %c0_i32, %c8_i32 : i32
    %1 = tpu.assume_multiple %0, 8 : i32
    %c0 = arith.constant 0 : index
    %2 = arith.index_cast %1 : i32 to index
    %c0_0 = arith.constant 0 : index
    %3 = vector.load %arg7[%c0, %2, %c0_0] : memref<5x8x128xf32, #tpu.memory_space<vmem>>, vector<1x8x128xf32>
    %4 = vector.shape_cast %3 : vector<1x8x128xf32> to vector<8x128xf32>
    %c1 = arith.constant 1 : index
    %5 = arith.index_cast %1 : i32 to index
    %c0_1 = arith.constant 0 : index
    %6 = vector.load %arg7[%c1, %5, %c0_1] : memref<5x8x128xf32, #tpu.memory_space<vmem>>, vector<1x8x128xf32>
    %7 = vector.shape_cast %6 : vector<1x8x128xf32> to vector<8x128xf32>
    %c2 = arith.constant 2 : index
    %8 = arith.index_cast %1 : i32 to index
    %c0_2 = arith.constant 0 : index
    %9 = vector.load %arg7[%c2, %8, %c0_2] : memref<5x8x128xf32, #tpu.memory_space<vmem>>, vector<1x8x128xf32>
    %10 = vector.shape_cast %9 : vector<1x8x128xf32> to vector<8x128xf32>
    %c3 = arith.constant 3 : index
    %11 = arith.index_cast %1 : i32 to index
    %c0_3 = arith.constant 0 : index
    %12 = vector.load %arg7[%c3, %11, %c0_3] : memref<5x8x128xf32, #tpu.memory_space<vmem>>, vector<1x8x128xf32>
    %13 = vector.shape_cast %12 : vector<1x8x128xf32> to vector<8x128xf32>
    %c4 = arith.constant 4 : index
    %14 = arith.index_cast %1 : i32 to index
    %c0_4 = arith.constant 0 : index
    %15 = vector.load %arg7[%c4, %14, %c0_4] : memref<5x8x128xf32, #tpu.memory_space<vmem>>, vector<1x8x128xf32>
    %16 = vector.shape_cast %15 : vector<1x8x128xf32> to vector<8x128xf32>
    %c0_5 = arith.constant 0 : index
    %c0_6 = arith.constant 0 : index
    %17 = memref.load %arg1[%c0_5, %c0_6] : memref<8x5xf32, #tpu.memory_space<smem>>
    %18 = vector.broadcast %17 : f32 to vector<8x128xf32>
    %19 = arith.mulf %4, %18 : vector<8x128xf32>
    %c0_7 = arith.constant 0 : index
    %c1_8 = arith.constant 1 : index
    %20 = memref.load %arg1[%c0_7, %c1_8] : memref<8x5xf32, #tpu.memory_space<smem>>
    %21 = vector.broadcast %20 : f32 to vector<8x128xf32>
    %22 = arith.mulf %7, %21 : vector<8x128xf32>
    %23 = arith.addf %19, %22 : vector<8x128xf32>
    %c0_9 = arith.constant 0 : index
    %c2_10 = arith.constant 2 : index
    %24 = memref.load %arg1[%c0_9, %c2_10] : memref<8x5xf32, #tpu.memory_space<smem>>
    %25 = vector.broadcast %24 : f32 to vector<8x128xf32>
    %26 = arith.mulf %10, %25 : vector<8x128xf32>
    %27 = arith.addf %23, %26 : vector<8x128xf32>
    %c0_11 = arith.constant 0 : index
    %c3_12 = arith.constant 3 : index
    %28 = memref.load %arg1[%c0_11, %c3_12] : memref<8x5xf32, #tpu.memory_space<smem>>
    %29 = vector.broadcast %28 : f32 to vector<8x128xf32>
    %30 = arith.mulf %13, %29 : vector<8x128xf32>
    %31 = arith.addf %27, %30 : vector<8x128xf32>
    %c0_13 = arith.constant 0 : index
    %c4_14 = arith.constant 4 : index
    %32 = memref.load %arg1[%c0_13, %c4_14] : memref<8x5xf32, #tpu.memory_space<smem>>
    %33 = vector.broadcast %32 : f32 to vector<8x128xf32>
    %34 = arith.mulf %16, %33 : vector<8x128xf32>
    %35 = arith.addf %31, %34 : vector<8x128xf32>
    %c0_15 = arith.constant 0 : index
    %36 = memref.load %arg2[%c0_15] : memref<8xf32, #tpu.memory_space<smem>>
    %37 = vector.broadcast %36 : f32 to vector<8x128xf32>
    %38 = arith.addf %35, %37 : vector<8x128xf32>
    %cst = arith.constant 0.000000e+00 : f32
    %39 = vector.broadcast %cst : f32 to vector<8x128xf32>
    %40 = arith.maximumf %38, %39 : vector<8x128xf32>
    %c1_16 = arith.constant 1 : index
    %c0_17 = arith.constant 0 : index
    %41 = memref.load %arg1[%c1_16, %c0_17] : memref<8x5xf32, #tpu.memory_space<smem>>
    %42 = vector.broadcast %41 : f32 to vector<8x128xf32>
    %43 = arith.mulf %4, %42 : vector<8x128xf32>
    %c1_18 = arith.constant 1 : index
    %c1_19 = arith.constant 1 : index
    %44 = memref.load %arg1[%c1_18, %c1_19] : memref<8x5xf32, #tpu.memory_space<smem>>
    %45 = vector.broadcast %44 : f32 to vector<8x128xf32>
    %46 = arith.mulf %7, %45 : vector<8x128xf32>
    %47 = arith.addf %43, %46 : vector<8x128xf32>
    %c1_20 = arith.constant 1 : index
    %c2_21 = arith.constant 2 : index
    %48 = memref.load %arg1[%c1_20, %c2_21] : memref<8x5xf32, #tpu.memory_space<smem>>
    %49 = vector.broadcast %48 : f32 to vector<8x128xf32>
    %50 = arith.mulf %10, %49 : vector<8x128xf32>
    %51 = arith.addf %47, %50 : vector<8x128xf32>
    %c1_22 = arith.constant 1 : index
    %c3_23 = arith.constant 3 : index
    %52 = memref.load %arg1[%c1_22, %c3_23] : memref<8x5xf32, #tpu.memory_space<smem>>
    %53 = vector.broadcast %52 : f32 to vector<8x128xf32>
    %54 = arith.mulf %13, %53 : vector<8x128xf32>
    %55 = arith.addf %51, %54 : vector<8x128xf32>
    %c1_24 = arith.constant 1 : index
    %c4_25 = arith.constant 4 : index
    %56 = memref.load %arg1[%c1_24, %c4_25] : memref<8x5xf32, #tpu.memory_space<smem>>
    %57 = vector.broadcast %56 : f32 to vector<8x128xf32>
    %58 = arith.mulf %16, %57 : vector<8x128xf32>
    %59 = arith.addf %55, %58 : vector<8x128xf32>
    %c1_26 = arith.constant 1 : index
    %60 = memref.load %arg2[%c1_26] : memref<8xf32, #tpu.memory_space<smem>>
    %61 = vector.broadcast %60 : f32 to vector<8x128xf32>
    %62 = arith.addf %59, %61 : vector<8x128xf32>
    %cst_27 = arith.constant 0.000000e+00 : f32
    %63 = vector.broadcast %cst_27 : f32 to vector<8x128xf32>
    %64 = arith.maximumf %62, %63 : vector<8x128xf32>
    %c2_28 = arith.constant 2 : index
    %c0_29 = arith.constant 0 : index
    %65 = memref.load %arg1[%c2_28, %c0_29] : memref<8x5xf32, #tpu.memory_space<smem>>
    %66 = vector.broadcast %65 : f32 to vector<8x128xf32>
    %67 = arith.mulf %4, %66 : vector<8x128xf32>
    %c2_30 = arith.constant 2 : index
    %c1_31 = arith.constant 1 : index
    %68 = memref.load %arg1[%c2_30, %c1_31] : memref<8x5xf32, #tpu.memory_space<smem>>
    %69 = vector.broadcast %68 : f32 to vector<8x128xf32>
    %70 = arith.mulf %7, %69 : vector<8x128xf32>
    %71 = arith.addf %67, %70 : vector<8x128xf32>
    %c2_32 = arith.constant 2 : index
    %c2_33 = arith.constant 2 : index
    %72 = memref.load %arg1[%c2_32, %c2_33] : memref<8x5xf32, #tpu.memory_space<smem>>
    %73 = vector.broadcast %72 : f32 to vector<8x128xf32>
    %74 = arith.mulf %10, %73 : vector<8x128xf32>
    %75 = arith.addf %71, %74 : vector<8x128xf32>
    %c2_34 = arith.constant 2 : index
    %c3_35 = arith.constant 3 : index
    %76 = memref.load %arg1[%c2_34, %c3_35] : memref<8x5xf32, #tpu.memory_space<smem>>
    %77 = vector.broadcast %76 : f32 to vector<8x128xf32>
    %78 = arith.mulf %13, %77 : vector<8x128xf32>
    %79 = arith.addf %75, %78 : vector<8x128xf32>
    %c2_36 = arith.constant 2 : index
    %c4_37 = arith.constant 4 : index
    %80 = memref.load %arg1[%c2_36, %c4_37] : memref<8x5xf32, #tpu.memory_space<smem>>
    %81 = vector.broadcast %80 : f32 to vector<8x128xf32>
    %82 = arith.mulf %16, %81 : vector<8x128xf32>
    %83 = arith.addf %79, %82 : vector<8x128xf32>
    %c2_38 = arith.constant 2 : index
    %84 = memref.load %arg2[%c2_38] : memref<8xf32, #tpu.memory_space<smem>>
    %85 = vector.broadcast %84 : f32 to vector<8x128xf32>
    %86 = arith.addf %83, %85 : vector<8x128xf32>
    %cst_39 = arith.constant 0.000000e+00 : f32
    %87 = vector.broadcast %cst_39 : f32 to vector<8x128xf32>
    %88 = arith.maximumf %86, %87 : vector<8x128xf32>
    %c3_40 = arith.constant 3 : index
    %c0_41 = arith.constant 0 : index
    %89 = memref.load %arg1[%c3_40, %c0_41] : memref<8x5xf32, #tpu.memory_space<smem>>
    %90 = vector.broadcast %89 : f32 to vector<8x128xf32>
    %91 = arith.mulf %4, %90 : vector<8x128xf32>
    %c3_42 = arith.constant 3 : index
    %c1_43 = arith.constant 1 : index
    %92 = memref.load %arg1[%c3_42, %c1_43] : memref<8x5xf32, #tpu.memory_space<smem>>
    %93 = vector.broadcast %92 : f32 to vector<8x128xf32>
    %94 = arith.mulf %7, %93 : vector<8x128xf32>
    %95 = arith.addf %91, %94 : vector<8x128xf32>
    %c3_44 = arith.constant 3 : index
    %c2_45 = arith.constant 2 : index
    %96 = memref.load %arg1[%c3_44, %c2_45] : memref<8x5xf32, #tpu.memory_space<smem>>
    %97 = vector.broadcast %96 : f32 to vector<8x128xf32>
    %98 = arith.mulf %10, %97 : vector<8x128xf32>
    %99 = arith.addf %95, %98 : vector<8x128xf32>
    %c3_46 = arith.constant 3 : index
    %c3_47 = arith.constant 3 : index
    %100 = memref.load %arg1[%c3_46, %c3_47] : memref<8x5xf32, #tpu.memory_space<smem>>
    %101 = vector.broadcast %100 : f32 to vector<8x128xf32>
    %102 = arith.mulf %13, %101 : vector<8x128xf32>
    %103 = arith.addf %99, %102 : vector<8x128xf32>
    %c3_48 = arith.constant 3 : index
    %c4_49 = arith.constant 4 : index
    %104 = memref.load %arg1[%c3_48, %c4_49] : memref<8x5xf32, #tpu.memory_space<smem>>
    %105 = vector.broadcast %104 : f32 to vector<8x128xf32>
    %106 = arith.mulf %16, %105 : vector<8x128xf32>
    %107 = arith.addf %103, %106 : vector<8x128xf32>
    %c3_50 = arith.constant 3 : index
    %108 = memref.load %arg2[%c3_50] : memref<8xf32, #tpu.memory_space<smem>>
    %109 = vector.broadcast %108 : f32 to vector<8x128xf32>
    %110 = arith.addf %107, %109 : vector<8x128xf32>
    %cst_51 = arith.constant 0.000000e+00 : f32
    %111 = vector.broadcast %cst_51 : f32 to vector<8x128xf32>
    %112 = arith.maximumf %110, %111 : vector<8x128xf32>
    %c4_52 = arith.constant 4 : index
    %c0_53 = arith.constant 0 : index
    %113 = memref.load %arg1[%c4_52, %c0_53] : memref<8x5xf32, #tpu.memory_space<smem>>
    %114 = vector.broadcast %113 : f32 to vector<8x128xf32>
    %115 = arith.mulf %4, %114 : vector<8x128xf32>
    %c4_54 = arith.constant 4 : index
    %c1_55 = arith.constant 1 : index
    %116 = memref.load %arg1[%c4_54, %c1_55] : memref<8x5xf32, #tpu.memory_space<smem>>
    %117 = vector.broadcast %116 : f32 to vector<8x128xf32>
    %118 = arith.mulf %7, %117 : vector<8x128xf32>
    %119 = arith.addf %115, %118 : vector<8x128xf32>
    %c4_56 = arith.constant 4 : index
    %c2_57 = arith.constant 2 : index
    %120 = memref.load %arg1[%c4_56, %c2_57] : memref<8x5xf32, #tpu.memory_space<smem>>
    %121 = vector.broadcast %120 : f32 to vector<8x128xf32>
    %122 = arith.mulf %10, %121 : vector<8x128xf32>
    %123 = arith.addf %119, %122 : vector<8x128xf32>
    %c4_58 = arith.constant 4 : index
    %c3_59 = arith.constant 3 : index
    %124 = memref.load %arg1[%c4_58, %c3_59] : memref<8x5xf32, #tpu.memory_space<smem>>
    %125 = vector.broadcast %124 : f32 to vector<8x128xf32>
    %126 = arith.mulf %13, %125 : vector<8x128xf32>
    %127 = arith.addf %123, %126 : vector<8x128xf32>
    %c4_60 = arith.constant 4 : index
    %c4_61 = arith.constant 4 : index
    %128 = memref.load %arg1[%c4_60, %c4_61] : memref<8x5xf32, #tpu.memory_space<smem>>
    %129 = vector.broadcast %128 : f32 to vector<8x128xf32>
    %130 = arith.mulf %16, %129 : vector<8x128xf32>
    %131 = arith.addf %127, %130 : vector<8x128xf32>
    %c4_62 = arith.constant 4 : index
    %132 = memref.load %arg2[%c4_62] : memref<8xf32, #tpu.memory_space<smem>>
    %133 = vector.broadcast %132 : f32 to vector<8x128xf32>
    %134 = arith.addf %131, %133 : vector<8x128xf32>
    %cst_63 = arith.constant 0.000000e+00 : f32
    %135 = vector.broadcast %cst_63 : f32 to vector<8x128xf32>
    %136 = arith.maximumf %134, %135 : vector<8x128xf32>
    %c5 = arith.constant 5 : index
    %c0_64 = arith.constant 0 : index
    %137 = memref.load %arg1[%c5, %c0_64] : memref<8x5xf32, #tpu.memory_space<smem>>
    %138 = vector.broadcast %137 : f32 to vector<8x128xf32>
    %139 = arith.mulf %4, %138 : vector<8x128xf32>
    %c5_65 = arith.constant 5 : index
    %c1_66 = arith.constant 1 : index
    %140 = memref.load %arg1[%c5_65, %c1_66] : memref<8x5xf32, #tpu.memory_space<smem>>
    %141 = vector.broadcast %140 : f32 to vector<8x128xf32>
    %142 = arith.mulf %7, %141 : vector<8x128xf32>
    %143 = arith.addf %139, %142 : vector<8x128xf32>
    %c5_67 = arith.constant 5 : index
    %c2_68 = arith.constant 2 : index
    %144 = memref.load %arg1[%c5_67, %c2_68] : memref<8x5xf32, #tpu.memory_space<smem>>
    %145 = vector.broadcast %144 : f32 to vector<8x128xf32>
    %146 = arith.mulf %10, %145 : vector<8x128xf32>
    %147 = arith.addf %143, %146 : vector<8x128xf32>
    %c5_69 = arith.constant 5 : index
    %c3_70 = arith.constant 3 : index
    %148 = memref.load %arg1[%c5_69, %c3_70] : memref<8x5xf32, #tpu.memory_space<smem>>
    %149 = vector.broadcast %148 : f32 to vector<8x128xf32>
    %150 = arith.mulf %13, %149 : vector<8x128xf32>
    %151 = arith.addf %147, %150 : vector<8x128xf32>
    %c5_71 = arith.constant 5 : index
    %c4_72 = arith.constant 4 : index
    %152 = memref.load %arg1[%c5_71, %c4_72] : memref<8x5xf32, #tpu.memory_space<smem>>
    %153 = vector.broadcast %152 : f32 to vector<8x128xf32>
    %154 = arith.mulf %16, %153 : vector<8x128xf32>
    %155 = arith.addf %151, %154 : vector<8x128xf32>
    %c5_73 = arith.constant 5 : index
    %156 = memref.load %arg2[%c5_73] : memref<8xf32, #tpu.memory_space<smem>>
    %157 = vector.broadcast %156 : f32 to vector<8x128xf32>
    %158 = arith.addf %155, %157 : vector<8x128xf32>
    %cst_74 = arith.constant 0.000000e+00 : f32
    %159 = vector.broadcast %cst_74 : f32 to vector<8x128xf32>
    %160 = arith.maximumf %158, %159 : vector<8x128xf32>
    %c6 = arith.constant 6 : index
    %c0_75 = arith.constant 0 : index
    %161 = memref.load %arg1[%c6, %c0_75] : memref<8x5xf32, #tpu.memory_space<smem>>
    %162 = vector.broadcast %161 : f32 to vector<8x128xf32>
    %163 = arith.mulf %4, %162 : vector<8x128xf32>
    %c6_76 = arith.constant 6 : index
    %c1_77 = arith.constant 1 : index
    %164 = memref.load %arg1[%c6_76, %c1_77] : memref<8x5xf32, #tpu.memory_space<smem>>
    %165 = vector.broadcast %164 : f32 to vector<8x128xf32>
    %166 = arith.mulf %7, %165 : vector<8x128xf32>
    %167 = arith.addf %163, %166 : vector<8x128xf32>
    %c6_78 = arith.constant 6 : index
    %c2_79 = arith.constant 2 : index
    %168 = memref.load %arg1[%c6_78, %c2_79] : memref<8x5xf32, #tpu.memory_space<smem>>
    %169 = vector.broadcast %168 : f32 to vector<8x128xf32>
    %170 = arith.mulf %10, %169 : vector<8x128xf32>
    %171 = arith.addf %167, %170 : vector<8x128xf32>
    %c6_80 = arith.constant 6 : index
    %c3_81 = arith.constant 3 : index
    %172 = memref.load %arg1[%c6_80, %c3_81] : memref<8x5xf32, #tpu.memory_space<smem>>
    %173 = vector.broadcast %172 : f32 to vector<8x128xf32>
    %174 = arith.mulf %13, %173 : vector<8x128xf32>
    %175 = arith.addf %171, %174 : vector<8x128xf32>
    %c6_82 = arith.constant 6 : index
    %c4_83 = arith.constant 4 : index
    %176 = memref.load %arg1[%c6_82, %c4_83] : memref<8x5xf32, #tpu.memory_space<smem>>
    %177 = vector.broadcast %176 : f32 to vector<8x128xf32>
    %178 = arith.mulf %16, %177 : vector<8x128xf32>
    %179 = arith.addf %175, %178 : vector<8x128xf32>
    %c6_84 = arith.constant 6 : index
    %180 = memref.load %arg2[%c6_84] : memref<8xf32, #tpu.memory_space<smem>>
    %181 = vector.broadcast %180 : f32 to vector<8x128xf32>
    %182 = arith.addf %179, %181 : vector<8x128xf32>
    %cst_85 = arith.constant 0.000000e+00 : f32
    %183 = vector.broadcast %cst_85 : f32 to vector<8x128xf32>
    %184 = arith.maximumf %182, %183 : vector<8x128xf32>
    %c7 = arith.constant 7 : index
    %c0_86 = arith.constant 0 : index
    %185 = memref.load %arg1[%c7, %c0_86] : memref<8x5xf32, #tpu.memory_space<smem>>
    %186 = vector.broadcast %185 : f32 to vector<8x128xf32>
    %187 = arith.mulf %4, %186 : vector<8x128xf32>
    %c7_87 = arith.constant 7 : index
    %c1_88 = arith.constant 1 : index
    %188 = memref.load %arg1[%c7_87, %c1_88] : memref<8x5xf32, #tpu.memory_space<smem>>
    %189 = vector.broadcast %188 : f32 to vector<8x128xf32>
    %190 = arith.mulf %7, %189 : vector<8x128xf32>
    %191 = arith.addf %187, %190 : vector<8x128xf32>
    %c7_89 = arith.constant 7 : index
    %c2_90 = arith.constant 2 : index
    %192 = memref.load %arg1[%c7_89, %c2_90] : memref<8x5xf32, #tpu.memory_space<smem>>
    %193 = vector.broadcast %192 : f32 to vector<8x128xf32>
    %194 = arith.mulf %10, %193 : vector<8x128xf32>
    %195 = arith.addf %191, %194 : vector<8x128xf32>
    %c7_91 = arith.constant 7 : index
    %c3_92 = arith.constant 3 : index
    %196 = memref.load %arg1[%c7_91, %c3_92] : memref<8x5xf32, #tpu.memory_space<smem>>
    %197 = vector.broadcast %196 : f32 to vector<8x128xf32>
    %198 = arith.mulf %13, %197 : vector<8x128xf32>
    %199 = arith.addf %195, %198 : vector<8x128xf32>
    %c7_93 = arith.constant 7 : index
    %c4_94 = arith.constant 4 : index
    %200 = memref.load %arg1[%c7_93, %c4_94] : memref<8x5xf32, #tpu.memory_space<smem>>
    %201 = vector.broadcast %200 : f32 to vector<8x128xf32>
    %202 = arith.mulf %16, %201 : vector<8x128xf32>
    %203 = arith.addf %199, %202 : vector<8x128xf32>
    %c7_95 = arith.constant 7 : index
    %204 = memref.load %arg2[%c7_95] : memref<8xf32, #tpu.memory_space<smem>>
    %205 = vector.broadcast %204 : f32 to vector<8x128xf32>
    %206 = arith.addf %203, %205 : vector<8x128xf32>
    %cst_96 = arith.constant 0.000000e+00 : f32
    %207 = vector.broadcast %cst_96 : f32 to vector<8x128xf32>
    %208 = arith.maximumf %206, %207 : vector<8x128xf32>
    %c0_97 = arith.constant 0 : index
    %c0_98 = arith.constant 0 : index
    %209 = memref.load %arg3[%c0_97, %c0_98] : memref<8x8xf32, #tpu.memory_space<smem>>
    %210 = vector.broadcast %209 : f32 to vector<8x128xf32>
    %211 = arith.mulf %40, %210 : vector<8x128xf32>
    %c0_99 = arith.constant 0 : index
    %c1_100 = arith.constant 1 : index
    %212 = memref.load %arg3[%c0_99, %c1_100] : memref<8x8xf32, #tpu.memory_space<smem>>
    %213 = vector.broadcast %212 : f32 to vector<8x128xf32>
    %214 = arith.mulf %64, %213 : vector<8x128xf32>
    %215 = arith.addf %211, %214 : vector<8x128xf32>
    %c0_101 = arith.constant 0 : index
    %c2_102 = arith.constant 2 : index
    %216 = memref.load %arg3[%c0_101, %c2_102] : memref<8x8xf32, #tpu.memory_space<smem>>
    %217 = vector.broadcast %216 : f32 to vector<8x128xf32>
    %218 = arith.mulf %88, %217 : vector<8x128xf32>
    %219 = arith.addf %215, %218 : vector<8x128xf32>
    %c0_103 = arith.constant 0 : index
    %c3_104 = arith.constant 3 : index
    %220 = memref.load %arg3[%c0_103, %c3_104] : memref<8x8xf32, #tpu.memory_space<smem>>
    %221 = vector.broadcast %220 : f32 to vector<8x128xf32>
    %222 = arith.mulf %112, %221 : vector<8x128xf32>
    %223 = arith.addf %219, %222 : vector<8x128xf32>
    %c0_105 = arith.constant 0 : index
    %c4_106 = arith.constant 4 : index
    %224 = memref.load %arg3[%c0_105, %c4_106] : memref<8x8xf32, #tpu.memory_space<smem>>
    %225 = vector.broadcast %224 : f32 to vector<8x128xf32>
    %226 = arith.mulf %136, %225 : vector<8x128xf32>
    %227 = arith.addf %223, %226 : vector<8x128xf32>
    %c0_107 = arith.constant 0 : index
    %c5_108 = arith.constant 5 : index
    %228 = memref.load %arg3[%c0_107, %c5_108] : memref<8x8xf32, #tpu.memory_space<smem>>
    %229 = vector.broadcast %228 : f32 to vector<8x128xf32>
    %230 = arith.mulf %160, %229 : vector<8x128xf32>
    %231 = arith.addf %227, %230 : vector<8x128xf32>
    %c0_109 = arith.constant 0 : index
    %c6_110 = arith.constant 6 : index
    %232 = memref.load %arg3[%c0_109, %c6_110] : memref<8x8xf32, #tpu.memory_space<smem>>
    %233 = vector.broadcast %232 : f32 to vector<8x128xf32>
    %234 = arith.mulf %184, %233 : vector<8x128xf32>
    %235 = arith.addf %231, %234 : vector<8x128xf32>
    %c0_111 = arith.constant 0 : index
    %c7_112 = arith.constant 7 : index
    %236 = memref.load %arg3[%c0_111, %c7_112] : memref<8x8xf32, #tpu.memory_space<smem>>
    %237 = vector.broadcast %236 : f32 to vector<8x128xf32>
    %238 = arith.mulf %208, %237 : vector<8x128xf32>
    %239 = arith.addf %235, %238 : vector<8x128xf32>
    %c0_113 = arith.constant 0 : index
    %240 = memref.load %arg4[%c0_113] : memref<8xf32, #tpu.memory_space<smem>>
    %241 = vector.broadcast %240 : f32 to vector<8x128xf32>
    %242 = arith.addf %239, %241 : vector<8x128xf32>
    %cst_114 = arith.constant 0.000000e+00 : f32
    %243 = vector.broadcast %cst_114 : f32 to vector<8x128xf32>
    %244 = arith.maximumf %242, %243 : vector<8x128xf32>
    %c1_115 = arith.constant 1 : index
    %c0_116 = arith.constant 0 : index
    %245 = memref.load %arg3[%c1_115, %c0_116] : memref<8x8xf32, #tpu.memory_space<smem>>
    %246 = vector.broadcast %245 : f32 to vector<8x128xf32>
    %247 = arith.mulf %40, %246 : vector<8x128xf32>
    %c1_117 = arith.constant 1 : index
    %c1_118 = arith.constant 1 : index
    %248 = memref.load %arg3[%c1_117, %c1_118] : memref<8x8xf32, #tpu.memory_space<smem>>
    %249 = vector.broadcast %248 : f32 to vector<8x128xf32>
    %250 = arith.mulf %64, %249 : vector<8x128xf32>
    %251 = arith.addf %247, %250 : vector<8x128xf32>
    %c1_119 = arith.constant 1 : index
    %c2_120 = arith.constant 2 : index
    %252 = memref.load %arg3[%c1_119, %c2_120] : memref<8x8xf32, #tpu.memory_space<smem>>
    %253 = vector.broadcast %252 : f32 to vector<8x128xf32>
    %254 = arith.mulf %88, %253 : vector<8x128xf32>
    %255 = arith.addf %251, %254 : vector<8x128xf32>
    %c1_121 = arith.constant 1 : index
    %c3_122 = arith.constant 3 : index
    %256 = memref.load %arg3[%c1_121, %c3_122] : memref<8x8xf32, #tpu.memory_space<smem>>
    %257 = vector.broadcast %256 : f32 to vector<8x128xf32>
    %258 = arith.mulf %112, %257 : vector<8x128xf32>
    %259 = arith.addf %255, %258 : vector<8x128xf32>
    %c1_123 = arith.constant 1 : index
    %c4_124 = arith.constant 4 : index
    %260 = memref.load %arg3[%c1_123, %c4_124] : memref<8x8xf32, #tpu.memory_space<smem>>
    %261 = vector.broadcast %260 : f32 to vector<8x128xf32>
    %262 = arith.mulf %136, %261 : vector<8x128xf32>
    %263 = arith.addf %259, %262 : vector<8x128xf32>
    %c1_125 = arith.constant 1 : index
    %c5_126 = arith.constant 5 : index
    %264 = memref.load %arg3[%c1_125, %c5_126] : memref<8x8xf32, #tpu.memory_space<smem>>
    %265 = vector.broadcast %264 : f32 to vector<8x128xf32>
    %266 = arith.mulf %160, %265 : vector<8x128xf32>
    %267 = arith.addf %263, %266 : vector<8x128xf32>
    %c1_127 = arith.constant 1 : index
    %c6_128 = arith.constant 6 : index
    %268 = memref.load %arg3[%c1_127, %c6_128] : memref<8x8xf32, #tpu.memory_space<smem>>
    %269 = vector.broadcast %268 : f32 to vector<8x128xf32>
    %270 = arith.mulf %184, %269 : vector<8x128xf32>
    %271 = arith.addf %267, %270 : vector<8x128xf32>
    %c1_129 = arith.constant 1 : index
    %c7_130 = arith.constant 7 : index
    %272 = memref.load %arg3[%c1_129, %c7_130] : memref<8x8xf32, #tpu.memory_space<smem>>
    %273 = vector.broadcast %272 : f32 to vector<8x128xf32>
    %274 = arith.mulf %208, %273 : vector<8x128xf32>
    %275 = arith.addf %271, %274 : vector<8x128xf32>
    %c1_131 = arith.constant 1 : index
    %276 = memref.load %arg4[%c1_131] : memref<8xf32, #tpu.memory_space<smem>>
    %277 = vector.broadcast %276 : f32 to vector<8x128xf32>
    %278 = arith.addf %275, %277 : vector<8x128xf32>
    %cst_132 = arith.constant 0.000000e+00 : f32
    %279 = vector.broadcast %cst_132 : f32 to vector<8x128xf32>
    %280 = arith.maximumf %278, %279 : vector<8x128xf32>
    %c2_133 = arith.constant 2 : index
    %c0_134 = arith.constant 0 : index
    %281 = memref.load %arg3[%c2_133, %c0_134] : memref<8x8xf32, #tpu.memory_space<smem>>
    %282 = vector.broadcast %281 : f32 to vector<8x128xf32>
    %283 = arith.mulf %40, %282 : vector<8x128xf32>
    %c2_135 = arith.constant 2 : index
    %c1_136 = arith.constant 1 : index
    %284 = memref.load %arg3[%c2_135, %c1_136] : memref<8x8xf32, #tpu.memory_space<smem>>
    %285 = vector.broadcast %284 : f32 to vector<8x128xf32>
    %286 = arith.mulf %64, %285 : vector<8x128xf32>
    %287 = arith.addf %283, %286 : vector<8x128xf32>
    %c2_137 = arith.constant 2 : index
    %c2_138 = arith.constant 2 : index
    %288 = memref.load %arg3[%c2_137, %c2_138] : memref<8x8xf32, #tpu.memory_space<smem>>
    %289 = vector.broadcast %288 : f32 to vector<8x128xf32>
    %290 = arith.mulf %88, %289 : vector<8x128xf32>
    %291 = arith.addf %287, %290 : vector<8x128xf32>
    %c2_139 = arith.constant 2 : index
    %c3_140 = arith.constant 3 : index
    %292 = memref.load %arg3[%c2_139, %c3_140] : memref<8x8xf32, #tpu.memory_space<smem>>
    %293 = vector.broadcast %292 : f32 to vector<8x128xf32>
    %294 = arith.mulf %112, %293 : vector<8x128xf32>
    %295 = arith.addf %291, %294 : vector<8x128xf32>
    %c2_141 = arith.constant 2 : index
    %c4_142 = arith.constant 4 : index
    %296 = memref.load %arg3[%c2_141, %c4_142] : memref<8x8xf32, #tpu.memory_space<smem>>
    %297 = vector.broadcast %296 : f32 to vector<8x128xf32>
    %298 = arith.mulf %136, %297 : vector<8x128xf32>
    %299 = arith.addf %295, %298 : vector<8x128xf32>
    %c2_143 = arith.constant 2 : index
    %c5_144 = arith.constant 5 : index
    %300 = memref.load %arg3[%c2_143, %c5_144] : memref<8x8xf32, #tpu.memory_space<smem>>
    %301 = vector.broadcast %300 : f32 to vector<8x128xf32>
    %302 = arith.mulf %160, %301 : vector<8x128xf32>
    %303 = arith.addf %299, %302 : vector<8x128xf32>
    %c2_145 = arith.constant 2 : index
    %c6_146 = arith.constant 6 : index
    %304 = memref.load %arg3[%c2_145, %c6_146] : memref<8x8xf32, #tpu.memory_space<smem>>
    %305 = vector.broadcast %304 : f32 to vector<8x128xf32>
    %306 = arith.mulf %184, %305 : vector<8x128xf32>
    %307 = arith.addf %303, %306 : vector<8x128xf32>
    %c2_147 = arith.constant 2 : index
    %c7_148 = arith.constant 7 : index
    %308 = memref.load %arg3[%c2_147, %c7_148] : memref<8x8xf32, #tpu.memory_space<smem>>
    %309 = vector.broadcast %308 : f32 to vector<8x128xf32>
    %310 = arith.mulf %208, %309 : vector<8x128xf32>
    %311 = arith.addf %307, %310 : vector<8x128xf32>
    %c2_149 = arith.constant 2 : index
    %312 = memref.load %arg4[%c2_149] : memref<8xf32, #tpu.memory_space<smem>>
    %313 = vector.broadcast %312 : f32 to vector<8x128xf32>
    %314 = arith.addf %311, %313 : vector<8x128xf32>
    %cst_150 = arith.constant 0.000000e+00 : f32
    %315 = vector.broadcast %cst_150 : f32 to vector<8x128xf32>
    %316 = arith.maximumf %314, %315 : vector<8x128xf32>
    %c3_151 = arith.constant 3 : index
    %c0_152 = arith.constant 0 : index
    %317 = memref.load %arg3[%c3_151, %c0_152] : memref<8x8xf32, #tpu.memory_space<smem>>
    %318 = vector.broadcast %317 : f32 to vector<8x128xf32>
    %319 = arith.mulf %40, %318 : vector<8x128xf32>
    %c3_153 = arith.constant 3 : index
    %c1_154 = arith.constant 1 : index
    %320 = memref.load %arg3[%c3_153, %c1_154] : memref<8x8xf32, #tpu.memory_space<smem>>
    %321 = vector.broadcast %320 : f32 to vector<8x128xf32>
    %322 = arith.mulf %64, %321 : vector<8x128xf32>
    %323 = arith.addf %319, %322 : vector<8x128xf32>
    %c3_155 = arith.constant 3 : index
    %c2_156 = arith.constant 2 : index
    %324 = memref.load %arg3[%c3_155, %c2_156] : memref<8x8xf32, #tpu.memory_space<smem>>
    %325 = vector.broadcast %324 : f32 to vector<8x128xf32>
    %326 = arith.mulf %88, %325 : vector<8x128xf32>
    %327 = arith.addf %323, %326 : vector<8x128xf32>
    %c3_157 = arith.constant 3 : index
    %c3_158 = arith.constant 3 : index
    %328 = memref.load %arg3[%c3_157, %c3_158] : memref<8x8xf32, #tpu.memory_space<smem>>
    %329 = vector.broadcast %328 : f32 to vector<8x128xf32>
    %330 = arith.mulf %112, %329 : vector<8x128xf32>
    %331 = arith.addf %327, %330 : vector<8x128xf32>
    %c3_159 = arith.constant 3 : index
    %c4_160 = arith.constant 4 : index
    %332 = memref.load %arg3[%c3_159, %c4_160] : memref<8x8xf32, #tpu.memory_space<smem>>
    %333 = vector.broadcast %332 : f32 to vector<8x128xf32>
    %334 = arith.mulf %136, %333 : vector<8x128xf32>
    %335 = arith.addf %331, %334 : vector<8x128xf32>
    %c3_161 = arith.constant 3 : index
    %c5_162 = arith.constant 5 : index
    %336 = memref.load %arg3[%c3_161, %c5_162] : memref<8x8xf32, #tpu.memory_space<smem>>
    %337 = vector.broadcast %336 : f32 to vector<8x128xf32>
    %338 = arith.mulf %160, %337 : vector<8x128xf32>
    %339 = arith.addf %335, %338 : vector<8x128xf32>
    %c3_163 = arith.constant 3 : index
    %c6_164 = arith.constant 6 : index
    %340 = memref.load %arg3[%c3_163, %c6_164] : memref<8x8xf32, #tpu.memory_space<smem>>
    %341 = vector.broadcast %340 : f32 to vector<8x128xf32>
    %342 = arith.mulf %184, %341 : vector<8x128xf32>
    %343 = arith.addf %339, %342 : vector<8x128xf32>
    %c3_165 = arith.constant 3 : index
    %c7_166 = arith.constant 7 : index
    %344 = memref.load %arg3[%c3_165, %c7_166] : memref<8x8xf32, #tpu.memory_space<smem>>
    %345 = vector.broadcast %344 : f32 to vector<8x128xf32>
    %346 = arith.mulf %208, %345 : vector<8x128xf32>
    %347 = arith.addf %343, %346 : vector<8x128xf32>
    %c3_167 = arith.constant 3 : index
    %348 = memref.load %arg4[%c3_167] : memref<8xf32, #tpu.memory_space<smem>>
    %349 = vector.broadcast %348 : f32 to vector<8x128xf32>
    %350 = arith.addf %347, %349 : vector<8x128xf32>
    %cst_168 = arith.constant 0.000000e+00 : f32
    %351 = vector.broadcast %cst_168 : f32 to vector<8x128xf32>
    %352 = arith.maximumf %350, %351 : vector<8x128xf32>
    %c4_169 = arith.constant 4 : index
    %c0_170 = arith.constant 0 : index
    %353 = memref.load %arg3[%c4_169, %c0_170] : memref<8x8xf32, #tpu.memory_space<smem>>
    %354 = vector.broadcast %353 : f32 to vector<8x128xf32>
    %355 = arith.mulf %40, %354 : vector<8x128xf32>
    %c4_171 = arith.constant 4 : index
    %c1_172 = arith.constant 1 : index
    %356 = memref.load %arg3[%c4_171, %c1_172] : memref<8x8xf32, #tpu.memory_space<smem>>
    %357 = vector.broadcast %356 : f32 to vector<8x128xf32>
    %358 = arith.mulf %64, %357 : vector<8x128xf32>
    %359 = arith.addf %355, %358 : vector<8x128xf32>
    %c4_173 = arith.constant 4 : index
    %c2_174 = arith.constant 2 : index
    %360 = memref.load %arg3[%c4_173, %c2_174] : memref<8x8xf32, #tpu.memory_space<smem>>
    %361 = vector.broadcast %360 : f32 to vector<8x128xf32>
    %362 = arith.mulf %88, %361 : vector<8x128xf32>
    %363 = arith.addf %359, %362 : vector<8x128xf32>
    %c4_175 = arith.constant 4 : index
    %c3_176 = arith.constant 3 : index
    %364 = memref.load %arg3[%c4_175, %c3_176] : memref<8x8xf32, #tpu.memory_space<smem>>
    %365 = vector.broadcast %364 : f32 to vector<8x128xf32>
    %366 = arith.mulf %112, %365 : vector<8x128xf32>
    %367 = arith.addf %363, %366 : vector<8x128xf32>
    %c4_177 = arith.constant 4 : index
    %c4_178 = arith.constant 4 : index
    %368 = memref.load %arg3[%c4_177, %c4_178] : memref<8x8xf32, #tpu.memory_space<smem>>
    %369 = vector.broadcast %368 : f32 to vector<8x128xf32>
    %370 = arith.mulf %136, %369 : vector<8x128xf32>
    %371 = arith.addf %367, %370 : vector<8x128xf32>
    %c4_179 = arith.constant 4 : index
    %c5_180 = arith.constant 5 : index
    %372 = memref.load %arg3[%c4_179, %c5_180] : memref<8x8xf32, #tpu.memory_space<smem>>
    %373 = vector.broadcast %372 : f32 to vector<8x128xf32>
    %374 = arith.mulf %160, %373 : vector<8x128xf32>
    %375 = arith.addf %371, %374 : vector<8x128xf32>
    %c4_181 = arith.constant 4 : index
    %c6_182 = arith.constant 6 : index
    %376 = memref.load %arg3[%c4_181, %c6_182] : memref<8x8xf32, #tpu.memory_space<smem>>
    %377 = vector.broadcast %376 : f32 to vector<8x128xf32>
    %378 = arith.mulf %184, %377 : vector<8x128xf32>
    %379 = arith.addf %375, %378 : vector<8x128xf32>
    %c4_183 = arith.constant 4 : index
    %c7_184 = arith.constant 7 : index
    %380 = memref.load %arg3[%c4_183, %c7_184] : memref<8x8xf32, #tpu.memory_space<smem>>
    %381 = vector.broadcast %380 : f32 to vector<8x128xf32>
    %382 = arith.mulf %208, %381 : vector<8x128xf32>
    %383 = arith.addf %379, %382 : vector<8x128xf32>
    %c4_185 = arith.constant 4 : index
    %384 = memref.load %arg4[%c4_185] : memref<8xf32, #tpu.memory_space<smem>>
    %385 = vector.broadcast %384 : f32 to vector<8x128xf32>
    %386 = arith.addf %383, %385 : vector<8x128xf32>
    %cst_186 = arith.constant 0.000000e+00 : f32
    %387 = vector.broadcast %cst_186 : f32 to vector<8x128xf32>
    %388 = arith.maximumf %386, %387 : vector<8x128xf32>
    %c5_187 = arith.constant 5 : index
    %c0_188 = arith.constant 0 : index
    %389 = memref.load %arg3[%c5_187, %c0_188] : memref<8x8xf32, #tpu.memory_space<smem>>
    %390 = vector.broadcast %389 : f32 to vector<8x128xf32>
    %391 = arith.mulf %40, %390 : vector<8x128xf32>
    %c5_189 = arith.constant 5 : index
    %c1_190 = arith.constant 1 : index
    %392 = memref.load %arg3[%c5_189, %c1_190] : memref<8x8xf32, #tpu.memory_space<smem>>
    %393 = vector.broadcast %392 : f32 to vector<8x128xf32>
    %394 = arith.mulf %64, %393 : vector<8x128xf32>
    %395 = arith.addf %391, %394 : vector<8x128xf32>
    %c5_191 = arith.constant 5 : index
    %c2_192 = arith.constant 2 : index
    %396 = memref.load %arg3[%c5_191, %c2_192] : memref<8x8xf32, #tpu.memory_space<smem>>
    %397 = vector.broadcast %396 : f32 to vector<8x128xf32>
    %398 = arith.mulf %88, %397 : vector<8x128xf32>
    %399 = arith.addf %395, %398 : vector<8x128xf32>
    %c5_193 = arith.constant 5 : index
    %c3_194 = arith.constant 3 : index
    %400 = memref.load %arg3[%c5_193, %c3_194] : memref<8x8xf32, #tpu.memory_space<smem>>
    %401 = vector.broadcast %400 : f32 to vector<8x128xf32>
    %402 = arith.mulf %112, %401 : vector<8x128xf32>
    %403 = arith.addf %399, %402 : vector<8x128xf32>
    %c5_195 = arith.constant 5 : index
    %c4_196 = arith.constant 4 : index
    %404 = memref.load %arg3[%c5_195, %c4_196] : memref<8x8xf32, #tpu.memory_space<smem>>
    %405 = vector.broadcast %404 : f32 to vector<8x128xf32>
    %406 = arith.mulf %136, %405 : vector<8x128xf32>
    %407 = arith.addf %403, %406 : vector<8x128xf32>
    %c5_197 = arith.constant 5 : index
    %c5_198 = arith.constant 5 : index
    %408 = memref.load %arg3[%c5_197, %c5_198] : memref<8x8xf32, #tpu.memory_space<smem>>
    %409 = vector.broadcast %408 : f32 to vector<8x128xf32>
    %410 = arith.mulf %160, %409 : vector<8x128xf32>
    %411 = arith.addf %407, %410 : vector<8x128xf32>
    %c5_199 = arith.constant 5 : index
    %c6_200 = arith.constant 6 : index
    %412 = memref.load %arg3[%c5_199, %c6_200] : memref<8x8xf32, #tpu.memory_space<smem>>
    %413 = vector.broadcast %412 : f32 to vector<8x128xf32>
    %414 = arith.mulf %184, %413 : vector<8x128xf32>
    %415 = arith.addf %411, %414 : vector<8x128xf32>
    %c5_201 = arith.constant 5 : index
    %c7_202 = arith.constant 7 : index
    %416 = memref.load %arg3[%c5_201, %c7_202] : memref<8x8xf32, #tpu.memory_space<smem>>
    %417 = vector.broadcast %416 : f32 to vector<8x128xf32>
    %418 = arith.mulf %208, %417 : vector<8x128xf32>
    %419 = arith.addf %415, %418 : vector<8x128xf32>
    %c5_203 = arith.constant 5 : index
    %420 = memref.load %arg4[%c5_203] : memref<8xf32, #tpu.memory_space<smem>>
    %421 = vector.broadcast %420 : f32 to vector<8x128xf32>
    %422 = arith.addf %419, %421 : vector<8x128xf32>
    %cst_204 = arith.constant 0.000000e+00 : f32
    %423 = vector.broadcast %cst_204 : f32 to vector<8x128xf32>
    %424 = arith.maximumf %422, %423 : vector<8x128xf32>
    %c6_205 = arith.constant 6 : index
    %c0_206 = arith.constant 0 : index
    %425 = memref.load %arg3[%c6_205, %c0_206] : memref<8x8xf32, #tpu.memory_space<smem>>
    %426 = vector.broadcast %425 : f32 to vector<8x128xf32>
    %427 = arith.mulf %40, %426 : vector<8x128xf32>
    %c6_207 = arith.constant 6 : index
    %c1_208 = arith.constant 1 : index
    %428 = memref.load %arg3[%c6_207, %c1_208] : memref<8x8xf32, #tpu.memory_space<smem>>
    %429 = vector.broadcast %428 : f32 to vector<8x128xf32>
    %430 = arith.mulf %64, %429 : vector<8x128xf32>
    %431 = arith.addf %427, %430 : vector<8x128xf32>
    %c6_209 = arith.constant 6 : index
    %c2_210 = arith.constant 2 : index
    %432 = memref.load %arg3[%c6_209, %c2_210] : memref<8x8xf32, #tpu.memory_space<smem>>
    %433 = vector.broadcast %432 : f32 to vector<8x128xf32>
    %434 = arith.mulf %88, %433 : vector<8x128xf32>
    %435 = arith.addf %431, %434 : vector<8x128xf32>
    %c6_211 = arith.constant 6 : index
    %c3_212 = arith.constant 3 : index
    %436 = memref.load %arg3[%c6_211, %c3_212] : memref<8x8xf32, #tpu.memory_space<smem>>
    %437 = vector.broadcast %436 : f32 to vector<8x128xf32>
    %438 = arith.mulf %112, %437 : vector<8x128xf32>
    %439 = arith.addf %435, %438 : vector<8x128xf32>
    %c6_213 = arith.constant 6 : index
    %c4_214 = arith.constant 4 : index
    %440 = memref.load %arg3[%c6_213, %c4_214] : memref<8x8xf32, #tpu.memory_space<smem>>
    %441 = vector.broadcast %440 : f32 to vector<8x128xf32>
    %442 = arith.mulf %136, %441 : vector<8x128xf32>
    %443 = arith.addf %439, %442 : vector<8x128xf32>
    %c6_215 = arith.constant 6 : index
    %c5_216 = arith.constant 5 : index
    %444 = memref.load %arg3[%c6_215, %c5_216] : memref<8x8xf32, #tpu.memory_space<smem>>
    %445 = vector.broadcast %444 : f32 to vector<8x128xf32>
    %446 = arith.mulf %160, %445 : vector<8x128xf32>
    %447 = arith.addf %443, %446 : vector<8x128xf32>
    %c6_217 = arith.constant 6 : index
    %c6_218 = arith.constant 6 : index
    %448 = memref.load %arg3[%c6_217, %c6_218] : memref<8x8xf32, #tpu.memory_space<smem>>
    %449 = vector.broadcast %448 : f32 to vector<8x128xf32>
    %450 = arith.mulf %184, %449 : vector<8x128xf32>
    %451 = arith.addf %447, %450 : vector<8x128xf32>
    %c6_219 = arith.constant 6 : index
    %c7_220 = arith.constant 7 : index
    %452 = memref.load %arg3[%c6_219, %c7_220] : memref<8x8xf32, #tpu.memory_space<smem>>
    %453 = vector.broadcast %452 : f32 to vector<8x128xf32>
    %454 = arith.mulf %208, %453 : vector<8x128xf32>
    %455 = arith.addf %451, %454 : vector<8x128xf32>
    %c6_221 = arith.constant 6 : index
    %456 = memref.load %arg4[%c6_221] : memref<8xf32, #tpu.memory_space<smem>>
    %457 = vector.broadcast %456 : f32 to vector<8x128xf32>
    %458 = arith.addf %455, %457 : vector<8x128xf32>
    %cst_222 = arith.constant 0.000000e+00 : f32
    %459 = vector.broadcast %cst_222 : f32 to vector<8x128xf32>
    %460 = arith.maximumf %458, %459 : vector<8x128xf32>
    %c7_223 = arith.constant 7 : index
    %c0_224 = arith.constant 0 : index
    %461 = memref.load %arg3[%c7_223, %c0_224] : memref<8x8xf32, #tpu.memory_space<smem>>
    %462 = vector.broadcast %461 : f32 to vector<8x128xf32>
    %463 = arith.mulf %40, %462 : vector<8x128xf32>
    %c7_225 = arith.constant 7 : index
    %c1_226 = arith.constant 1 : index
    %464 = memref.load %arg3[%c7_225, %c1_226] : memref<8x8xf32, #tpu.memory_space<smem>>
    %465 = vector.broadcast %464 : f32 to vector<8x128xf32>
    %466 = arith.mulf %64, %465 : vector<8x128xf32>
    %467 = arith.addf %463, %466 : vector<8x128xf32>
    %c7_227 = arith.constant 7 : index
    %c2_228 = arith.constant 2 : index
    %468 = memref.load %arg3[%c7_227, %c2_228] : memref<8x8xf32, #tpu.memory_space<smem>>
    %469 = vector.broadcast %468 : f32 to vector<8x128xf32>
    %470 = arith.mulf %88, %469 : vector<8x128xf32>
    %471 = arith.addf %467, %470 : vector<8x128xf32>
    %c7_229 = arith.constant 7 : index
    %c3_230 = arith.constant 3 : index
    %472 = memref.load %arg3[%c7_229, %c3_230] : memref<8x8xf32, #tpu.memory_space<smem>>
    %473 = vector.broadcast %472 : f32 to vector<8x128xf32>
    %474 = arith.mulf %112, %473 : vector<8x128xf32>
    %475 = arith.addf %471, %474 : vector<8x128xf32>
    %c7_231 = arith.constant 7 : index
    %c4_232 = arith.constant 4 : index
    %476 = memref.load %arg3[%c7_231, %c4_232] : memref<8x8xf32, #tpu.memory_space<smem>>
    %477 = vector.broadcast %476 : f32 to vector<8x128xf32>
    %478 = arith.mulf %136, %477 : vector<8x128xf32>
    %479 = arith.addf %475, %478 : vector<8x128xf32>
    %c7_233 = arith.constant 7 : index
    %c5_234 = arith.constant 5 : index
    %480 = memref.load %arg3[%c7_233, %c5_234] : memref<8x8xf32, #tpu.memory_space<smem>>
    %481 = vector.broadcast %480 : f32 to vector<8x128xf32>
    %482 = arith.mulf %160, %481 : vector<8x128xf32>
    %483 = arith.addf %479, %482 : vector<8x128xf32>
    %c7_235 = arith.constant 7 : index
    %c6_236 = arith.constant 6 : index
    %484 = memref.load %arg3[%c7_235, %c6_236] : memref<8x8xf32, #tpu.memory_space<smem>>
    %485 = vector.broadcast %484 : f32 to vector<8x128xf32>
    %486 = arith.mulf %184, %485 : vector<8x128xf32>
    %487 = arith.addf %483, %486 : vector<8x128xf32>
    %c7_237 = arith.constant 7 : index
    %c7_238 = arith.constant 7 : index
    %488 = memref.load %arg3[%c7_237, %c7_238] : memref<8x8xf32, #tpu.memory_space<smem>>
    %489 = vector.broadcast %488 : f32 to vector<8x128xf32>
    %490 = arith.mulf %208, %489 : vector<8x128xf32>
    %491 = arith.addf %487, %490 : vector<8x128xf32>
    %c7_239 = arith.constant 7 : index
    %492 = memref.load %arg4[%c7_239] : memref<8xf32, #tpu.memory_space<smem>>
    %493 = vector.broadcast %492 : f32 to vector<8x128xf32>
    %494 = arith.addf %491, %493 : vector<8x128xf32>
    %cst_240 = arith.constant 0.000000e+00 : f32
    %495 = vector.broadcast %cst_240 : f32 to vector<8x128xf32>
    %496 = arith.maximumf %494, %495 : vector<8x128xf32>
    %c0_241 = arith.constant 0 : index
    %c0_242 = arith.constant 0 : index
    %497 = memref.load %arg5[%c0_241, %c0_242] : memref<1x8xf32, #tpu.memory_space<smem>>
    %498 = vector.broadcast %497 : f32 to vector<8x128xf32>
    %499 = arith.mulf %244, %498 : vector<8x128xf32>
    %c0_243 = arith.constant 0 : index
    %c1_244 = arith.constant 1 : index
    %500 = memref.load %arg5[%c0_243, %c1_244] : memref<1x8xf32, #tpu.memory_space<smem>>
    %501 = vector.broadcast %500 : f32 to vector<8x128xf32>
    %502 = arith.mulf %280, %501 : vector<8x128xf32>
    %503 = arith.addf %499, %502 : vector<8x128xf32>
    %c0_245 = arith.constant 0 : index
    %c2_246 = arith.constant 2 : index
    %504 = memref.load %arg5[%c0_245, %c2_246] : memref<1x8xf32, #tpu.memory_space<smem>>
    %505 = vector.broadcast %504 : f32 to vector<8x128xf32>
    %506 = arith.mulf %316, %505 : vector<8x128xf32>
    %507 = arith.addf %503, %506 : vector<8x128xf32>
    %c0_247 = arith.constant 0 : index
    %c3_248 = arith.constant 3 : index
    %508 = memref.load %arg5[%c0_247, %c3_248] : memref<1x8xf32, #tpu.memory_space<smem>>
    %509 = vector.broadcast %508 : f32 to vector<8x128xf32>
    %510 = arith.mulf %352, %509 : vector<8x128xf32>
    %511 = arith.addf %507, %510 : vector<8x128xf32>
    %c0_249 = arith.constant 0 : index
    %c4_250 = arith.constant 4 : index
    %512 = memref.load %arg5[%c0_249, %c4_250] : memref<1x8xf32, #tpu.memory_space<smem>>
    %513 = vector.broadcast %512 : f32 to vector<8x128xf32>
    %514 = arith.mulf %388, %513 : vector<8x128xf32>
    %515 = arith.addf %511, %514 : vector<8x128xf32>
    %c0_251 = arith.constant 0 : index
    %c5_252 = arith.constant 5 : index
    %516 = memref.load %arg5[%c0_251, %c5_252] : memref<1x8xf32, #tpu.memory_space<smem>>
    %517 = vector.broadcast %516 : f32 to vector<8x128xf32>
    %518 = arith.mulf %424, %517 : vector<8x128xf32>
    %519 = arith.addf %515, %518 : vector<8x128xf32>
    %c0_253 = arith.constant 0 : index
    %c6_254 = arith.constant 6 : index
    %520 = memref.load %arg5[%c0_253, %c6_254] : memref<1x8xf32, #tpu.memory_space<smem>>
    %521 = vector.broadcast %520 : f32 to vector<8x128xf32>
    %522 = arith.mulf %460, %521 : vector<8x128xf32>
    %523 = arith.addf %519, %522 : vector<8x128xf32>
    %c0_255 = arith.constant 0 : index
    %c7_256 = arith.constant 7 : index
    %524 = memref.load %arg5[%c0_255, %c7_256] : memref<1x8xf32, #tpu.memory_space<smem>>
    %525 = vector.broadcast %524 : f32 to vector<8x128xf32>
    %526 = arith.mulf %496, %525 : vector<8x128xf32>
    %527 = arith.addf %523, %526 : vector<8x128xf32>
    %c0_257 = arith.constant 0 : index
    %528 = memref.load %arg6[%c0_257] : memref<1xf32, #tpu.memory_space<smem>>
    %529 = vector.broadcast %528 : f32 to vector<8x128xf32>
    %530 = arith.addf %527, %529 : vector<8x128xf32>
    %cst_258 = arith.constant 0.000000e+00 : f32
    %531 = vector.broadcast %cst_258 : f32 to vector<8x128xf32>
    %532 = arith.subf %531, %530 : vector<8x128xf32>
    %533 = math.exp %532 : vector<8x128xf32>
    %cst_259 = arith.constant 1.000000e+00 : f32
    %534 = vector.broadcast %cst_259 : f32 to vector<8x128xf32>
    %535 = arith.addf %534, %533 : vector<8x128xf32>
    %536 = tpu.reciprocal %535 {approx = true} : vector<8x128xf32> -> vector<8x128xf32>
    %c0_260 = arith.constant 0 : index
    %537 = arith.index_cast %1 : i32 to index
    %c0_261 = arith.constant 0 : index
    %538 = vector.load %arg8[%c0_260, %537, %c0_261] : memref<1x8x128xf32, #tpu.memory_space<vmem>>, vector<1x8x128xf32>
    %539 = vector.shape_cast %538 : vector<1x8x128xf32> to vector<8x128xf32>
    %540 = vector.shape_cast %536 : vector<8x128xf32> to vector<1x8x128xf32>
    tpu.vector_store %arg8[%c0_260, %537, %c0_261], %540 {strides = array<i32>} : memref<1x8x128xf32, #tpu.memory_space<vmem>>, vector<1x8x128xf32>,
    %c1_i32 = arith.constant 1 : i32
    return
  }
  func.func @transform_0(%arg0: i32) -> (i32, i32) {
    %c0_i32 = arith.constant 0 : i32
    %c0_i32_0 = arith.constant 0 : i32
    %c0_i32_1 = arith.constant 0 : i32
    return %c0_i32, %c0_i32_0 : i32, i32
  }
  func.func @transform_1(%arg0: i32) -> i32 {
    %c0_i32 = arith.constant 0 : i32
    %c0_i32_0 = arith.constant 0 : i32
    return %c0_i32 : i32
  }
  func.func @transform_2(%arg0: i32) -> (i32, i32) {
    %c0_i32 = arith.constant 0 : i32
    %c0_i32_0 = arith.constant 0 : i32
    %c0_i32_1 = arith.constant 0 : i32
    return %c0_i32, %c0_i32_0 : i32, i32
  }
  func.func @transform_3(%arg0: i32) -> i32 {
    %c0_i32 = arith.constant 0 : i32
    %c0_i32_0 = arith.constant 0 : i32
    return %c0_i32 : i32
  }
  func.func @transform_4(%arg0: i32) -> (i32, i32) {
    %c0_i32 = arith.constant 0 : i32
    %c0_i32_0 = arith.constant 0 : i32
    %c0_i32_1 = arith.constant 0 : i32
    return %c0_i32, %c0_i32_0 : i32, i32
  }
  func.func @transform_5(%arg0: i32) -> i32 {
    %c0_i32 = arith.constant 0 : i32
    %c0_i32_0 = arith.constant 0 : i32
    return %c0_i32 : i32
  }
  func.func @transform_6(%arg0: i32) -> (i32, i32, i32) {
    %c0_i32 = arith.constant 0 : i32
    %c0_i32_0 = arith.constant 0 : i32
    %c0_i32_1 = arith.constant 0 : i32
    return %c0_i32, %arg0, %c0_i32_0 : i32, i32, i32
  }
  func.func @transform_7(%arg0: i32) -> (i32, i32, i32) {
    %c0_i32 = arith.constant 0 : i32
    %c0_i32_0 = arith.constant 0 : i32
    %c0_i32_1 = arith.constant 0 : i32
    return %c0_i32, %arg0, %c0_i32_0 : i32, i32, i32
  }
}

</mosaic_0001>

<llo_original>
// kernel: ai_forward_feature_major.1
$region0: #{ai_forward_feature_major.1}
  #allocation0 [shape = 'u32[]', space=smem, size = 0x4, offset = 0x4, fixed_abs, tag = 'smem constant byte address 0x4 - core index']
  #allocation1 [shape = 'u32[144,128]{1,0:T(1,128)}', space=vmem, size = 0x12000, scoped, tag = 'internal scratch']
  #allocation2 [shape = 'f32[1]{0:T(128)S(6)}', space=smem, size = 0x200, scoped, tag = 'scoped memory for ai_forward_feature_major.1']
  %s0 = inlined_call_operand.vmem [shape: f32[8,5], index: 0, kind: input, shape index: {}]
  %s1 = inlined_call_operand.vmem [shape: f32[8], index: 1, kind: input, shape index: {}]
  %s2 = inlined_call_operand.vmem [shape: f32[8,8], index: 2, kind: input, shape index: {}]
  %s3 = inlined_call_operand.vmem [shape: f32[8], index: 3, kind: input, shape index: {}]
  %s4 = inlined_call_operand.vmem [shape: f32[1,8], index: 4, kind: input, shape index: {}]
  %s5 = inlined_call_operand.<no memory space> [shape: f32[1], index: 5, kind: input, shape index: {}]
  %s6 = inlined_call_operand.vmem [shape: f32[5,8,128], index: 6, kind: input, shape index: {}]
  %s7 = inlined_call_operand.vmem [shape: f32[1,8,128], index: 7, kind: output, shape index: {}]
  %s8 = sld [smem:[#allocation0]]
  $region58: #{ai_forward_feature_major.1} parent=0
    _
  %s10 = ssub.s32 1, %s8
  %s11 = scalar_select 0, %s10, %s8
  %12 = sst [smem:[#allocation2]] %s5
  $region1: #{ai_forward_feature_major.1} parent=0
    #allocation3 [shape = 'u8[4096]{0}', space=smem, size = 0x1000, scoped, tag = 'input window, operand 0, single buffered']
    #allocation4 [shape = 's32[1]{0}', space=sflag, size = 0x4, scoped, tag = 'scoped memory for ai_forward_feature_major.1']
    #allocation5 [shape = 'u8[512]{0}', space=smem, size = 0x200, scoped, tag = 'input window, operand 1, single buffered']
    #allocation6 [shape = 's32[1]{0}', space=sflag, size = 0x4, scoped, tag = 'scoped memory for ai_forward_feature_major.1']
    #allocation7 [shape = 'u8[4096]{0}', space=smem, size = 0x1000, scoped, tag = 'input window, operand 2, single buffered']
    #allocation8 [shape = 'u8[512]{0}', space=smem, size = 0x200, scoped, tag = 'input window, operand 3, single buffered']
    #allocation9 [shape = 's32[1]{0}', space=sflag, size = 0x4, scoped, tag = 'scoped memory for ai_forward_feature_major.1']
    #allocation10 [shape = 'u8[512]{0}', space=smem, size = 0x200, scoped, tag = 'input window, operand 4, single buffered']
    %13 = vsyncpa [#allocation4], 0
    %14 = vsyncpa [#allocation6], 0
    %15 = vsyncpa [#allocation9], 0
    // Predicated region
    $region2: #{ai_forward_feature_major.1} parent=1 // pred_check
      _
    $region3: #{ai_forward_feature_major.1} parent=1 // pred_check_branch
      %17 = sbr.rel (0) target = $region5
    $region4: #{ai_forward_feature_major.1} parent=1 // pred_region
      %s19 = ssub.s32 128, 128
      %20 = vsyncadd [#allocation4], %s19
      %s22 = sshll.u32 %s0, 4
      %s23 = int_to_ptr.vmem [resolvable:$true] %s22
      %25 = dma.vmem_to_smem %s23, 128, [#allocation3], [#allocation4]
    $region5: #{ai_forward_feature_major.1} parent=1 // pred_fallthru
      _
    // Predicated region
    $region6: #{ai_forward_feature_major.1} parent=1 // pred_check
      _
    $region7: #{ai_forward_feature_major.1} parent=1 // pred_check_branch
      %27 = sbr.rel (0) target = $region9
    $region8: #{ai_forward_feature_major.1} parent=1 // pred_region
      %s29 = ssub.s32 16, 16
      %30 = vsyncadd [#allocation6], %s29
      %s32 = sshll.u32 %s1, 4
      %s33 = int_to_ptr.vmem [resolvable:$true] %s32
      %35 = dma.vmem_to_smem %s33, 16, [#allocation5], [#allocation6]
    $region9: #{ai_forward_feature_major.1} parent=1 // pred_fallthru
      _
    // Predicated region
    $region10: #{ai_forward_feature_major.1} parent=1 // pred_check
      _
    $region11: #{ai_forward_feature_major.1} parent=1 // pred_check_branch
      %37 = sbr.rel (0) target = $region13
    $region12: #{ai_forward_feature_major.1} parent=1 // pred_region
      %s39 = ssub.s32 128, 128
      %40 = vsyncadd [#allocation6], %s39
      %s42 = sshll.u32 %s2, 4
      %s43 = int_to_ptr.vmem [resolvable:$true] %s42
      %45 = dma.vmem_to_smem %s43, 128, [#allocation7], [#allocation6]
    $region13: #{ai_forward_feature_major.1} parent=1 // pred_fallthru
      _
    // Predicated region
    $region14: #{ai_forward_feature_major.1} parent=1 // pred_check
      _
    $region15: #{ai_forward_feature_major.1} parent=1 // pred_check_branch
      %47 = sbr.rel (0) target = $region17
    $region16: #{ai_forward_feature_major.1} parent=1 // pred_region
      %s49 = ssub.s32 16, 16
      %50 = vsyncadd [#allocation9], %s49
      %s52 = sshll.u32 %s3, 4
      %s53 = int_to_ptr.vmem [resolvable:$true] %s52
      %55 = dma.vmem_to_smem %s53, 16, [#allocation8], [#allocation9]
    $region17: #{ai_forward_feature_major.1} parent=1 // pred_fallthru
      _
    // Predicated region
    $region18: #{ai_forward_feature_major.1} parent=1 // pred_check
      _
    $region19: #{ai_forward_feature_major.1} parent=1 // pred_check_branch
      %57 = sbr.rel (0) target = $region21
    $region20: #{ai_forward_feature_major.1} parent=1 // pred_region
      %s59 = ssub.s32 16, 16
      %60 = vsyncadd [#allocation9], %s59
      %s62 = sshll.u32 %s4, 4
      %s63 = int_to_ptr.vmem [resolvable:$true] %s62
      %65 = dma.vmem_to_smem %s63, 16, [#allocation10], [#allocation9]
    $region21: #{ai_forward_feature_major.1} parent=1 // pred_fallthru
      _
    // Predicated region
    $region22: #{ai_forward_feature_major.1} parent=1 // pred_check
      _
    $region23: #{ai_forward_feature_major.1} parent=1 // pred_check_branch
      %67 = sbr.rel (0) target = $region25
    $region24: #{ai_forward_feature_major.1} parent=1 // pred_region
      _
    $region25: #{ai_forward_feature_major.1} parent=1 // pred_fallthru
      _
    // Predicated region
    $region26: #{ai_forward_feature_major.1} parent=1 // pred_check
      _
    $region27: #{ai_forward_feature_major.1} parent=1 // pred_check_branch
      %69 = sbr.rel (0) target = $region29
    $region28: #{ai_forward_feature_major.1} parent=1 // pred_region
      _
    $region29: #{ai_forward_feature_major.1} parent=1 // pred_fallthru
      _
    // Predicated region
    $region30: #{ai_forward_feature_major.1} parent=1 // pred_check
      _
    $region31: #{ai_forward_feature_major.1} parent=1 // pred_check_branch
      %71 = sbr.rel (0) target = $region33
    $region32: #{ai_forward_feature_major.1} parent=1 // pred_region
      %72 = dma.done [#allocation4], 128
    $region33: #{ai_forward_feature_major.1} parent=1 // pred_fallthru
      _
    // Predicated region
    $region34: #{ai_forward_feature_major.1} parent=1 // pred_check
      _
    $region35: #{ai_forward_feature_major.1} parent=1 // pred_check_branch
      %74 = sbr.rel (0) target = $region37
    $region36: #{ai_forward_feature_major.1} parent=1 // pred_region
      %75 = dma.done [#allocation6], 16
    $region37: #{ai_forward_feature_major.1} parent=1 // pred_fallthru
      _
    // Predicated region
    $region38: #{ai_forward_feature_major.1} parent=1 // pred_check
      _
    $region39: #{ai_forward_feature_major.1} parent=1 // pred_check_branch
      %77 = sbr.rel (0) target = $region41
    $region40: #{ai_forward_feature_major.1} parent=1 // pred_region
      %78 = dma.done [#allocation6], 128
    $region41: #{ai_forward_feature_major.1} parent=1 // pred_fallthru
      _
    // Predicated region
    $region42: #{ai_forward_feature_major.1} parent=1 // pred_check
      _
    $region43: #{ai_forward_feature_major.1} parent=1 // pred_check_branch
      %80 = sbr.rel (0) target = $region45
    $region44: #{ai_forward_feature_major.1} parent=1 // pred_region
      %81 = dma.done [#allocation9], 16
    $region45: #{ai_forward_feature_major.1} parent=1 // pred_fallthru
      _
    // Predicated region
    $region46: #{ai_forward_feature_major.1} parent=1 // pred_check
      _
    $region47: #{ai_forward_feature_major.1} parent=1 // pred_check_branch
      %83 = sbr.rel (0) target = $region49
    $region48: #{ai_forward_feature_major.1} parent=1 // pred_region
      %84 = dma.done [#allocation9], 16
    $region49: #{ai_forward_feature_major.1} parent=1 // pred_fallthru
      _
    %85 = sfence
    %v86 = vld [vmem:[%s6] sm:$0xff]
    %s87 = sadd.s32 0, 8
    %s88 = scalar_lea.vmem %s6, %s87
    %v89 = vld [vmem:[%s88] sm:$0xff]
    %s90 = sadd.s32 0, 16
    %s91 = scalar_lea.vmem %s6, %s90
    %v92 = vld [vmem:[%s91] sm:$0xff]
    %s93 = sadd.s32 0, 24
    %s94 = scalar_lea.vmem %s6, %s93
    %v95 = vld [vmem:[%s94] sm:$0xff]
    %s96 = sadd.s32 0, 32
    %s97 = scalar_lea.vmem %s6, %s96
    %v98 = vld [vmem:[%s97] sm:$0xff]
    %s99 = sld [smem:[#allocation3]]
    %v100 = vstv %s99
    %v101 = vmul.f32 %v86, %v100
    %s102 = sld [smem:[#allocation3 + $0x1]]
    %v103 = vstv %s102
    %v104 = vmul.f32 %v89, %v103
    %v105 = vadd.f32 %v101, %v104
    %s106 = sld [smem:[#allocation3 + $0x2]]
    %v107 = vstv %s106
    %v108 = vmul.f32 %v92, %v107
    %v109 = vadd.f32 %v105, %v108
    %s110 = sld [smem:[#allocation3 + $0x3]]
    %v111 = vstv %s110
    %v112 = vmul.f32 %v95, %v111
    %v113 = vadd.f32 %v109, %v112
    %s114 = sld [smem:[#allocation3 + $0x4]]
    %v115 = vstv %s114
    %v116 = vmul.f32 %v98, %v115
    %v117 = vadd.f32 %v113, %v116
    %s118 = sld [smem:[#allocation5]]
    %v119 = vstv %s118
    %v120 = vadd.f32 %v117, %v119
    %v121 = vmax.f32 %v120, 0.0
    %s122 = sld [smem:[#allocation3 + $0x80]]
    %v123 = vstv %s122
    %v124 = vmul.f32 %v86, %v123
    %s125 = sld [smem:[#allocation3 + $0x81]]
    %v126 = vstv %s125
    %v127 = vmul.f32 %v89, %v126
    %v128 = vadd.f32 %v124, %v127
    %s129 = sld [smem:[#allocation3 + $0x82]]
    %v130 = vstv %s129
    %v131 = vmul.f32 %v92, %v130
    %v132 = vadd.f32 %v128, %v131
    %s133 = sld [smem:[#allocation3 + $0x83]]
    %v134 = vstv %s133
    %v135 = vmul.f32 %v95, %v134
    %v136 = vadd.f32 %v132, %v135
    %s137 = sld [smem:[#allocation3 + $0x84]]
    %v138 = vstv %s137
    %v139 = vmul.f32 %v98, %v138
    %v140 = vadd.f32 %v136, %v139
    %s141 = sld [smem:[#allocation5 + $0x1]]
    %v142 = vstv %s141
    %v143 = vadd.f32 %v140, %v142
    %v144 = vmax.f32 %v143, 0.0
    %s145 = sld [smem:[#allocation3 + $0x100]]
    %v146 = vstv %s145
    %v147 = vmul.f32 %v86, %v146
    %s148 = sld [smem:[#allocation3 + $0x101]]
    %v149 = vstv %s148
    %v150 = vmul.f32 %v89, %v149
    %v151 = vadd.f32 %v147, %v150
    %s152 = sld [smem:[#allocation3 + $0x102]]
    %v153 = vstv %s152
    %v154 = vmul.f32 %v92, %v153
    %v155 = vadd.f32 %v151, %v154
    %s156 = sld [smem:[#allocation3 + $0x103]]
    %v157 = vstv %s156
    %v158 = vmul.f32 %v95, %v157
    %v159 = vadd.f32 %v155, %v158
    %s160 = sld [smem:[#allocation3 + $0x104]]
    %v161 = vstv %s160
    %v162 = vmul.f32 %v98, %v161
    %v163 = vadd.f32 %v159, %v162
    %s164 = sld [smem:[#allocation5 + $0x2]]
    %v165 = vstv %s164
    %v166 = vadd.f32 %v163, %v165
    %v167 = vmax.f32 %v166, 0.0
    %s168 = sld [smem:[#allocation3 + $0x180]]
    %v169 = vstv %s168
    %v170 = vmul.f32 %v86, %v169
    %s171 = sld [smem:[#allocation3 + $0x181]]
    %v172 = vstv %s171
    %v173 = vmul.f32 %v89, %v172
    %v174 = vadd.f32 %v170, %v173
    %s175 = sld [smem:[#allocation3 + $0x182]]
    %v176 = vstv %s175
    %v177 = vmul.f32 %v92, %v176
    %v178 = vadd.f32 %v174, %v177
    %s179 = sld [smem:[#allocation3 + $0x183]]
    %v180 = vstv %s179
    %v181 = vmul.f32 %v95, %v180
    %v182 = vadd.f32 %v178, %v181
    %s183 = sld [smem:[#allocation3 + $0x184]]
    %v184 = vstv %s183
    %v185 = vmul.f32 %v98, %v184
    %v186 = vadd.f32 %v182, %v185
    %s187 = sld [smem:[#allocation5 + $0x3]]
    %v188 = vstv %s187
    %v189 = vadd.f32 %v186, %v188
    %v190 = vmax.f32 %v189, 0.0
    %s191 = sld [smem:[#allocation3 + $0x200]]
    %v192 = vstv %s191
    %v193 = vmul.f32 %v86, %v192
    %s194 = sld [smem:[#allocation3 + $0x201]]
    %v195 = vstv %s194
    %v196 = vmul.f32 %v89, %v195
    %v197 = vadd.f32 %v193, %v196
    %s198 = sld [smem:[#allocation3 + $0x202]]
    %v199 = vstv %s198
    %v200 = vmul.f32 %v92, %v199
    %v201 = vadd.f32 %v197, %v200
    %s202 = sld [smem:[#allocation3 + $0x203]]
    %v203 = vstv %s202
    %v204 = vmul.f32 %v95, %v203
    %v205 = vadd.f32 %v201, %v204
    %s206 = sld [smem:[#allocation3 + $0x204]]
    %v207 = vstv %s206
    %v208 = vmul.f32 %v98, %v207
    %v209 = vadd.f32 %v205, %v208
    %s210 = sld [smem:[#allocation5 + $0x4]]
    %v211 = vstv %s210
    %v212 = vadd.f32 %v209, %v211
    %v213 = vmax.f32 %v212, 0.0
    %s214 = sld [smem:[#allocation3 + $0x280]]
    %v215 = vstv %s214
    %v216 = vmul.f32 %v86, %v215
    %s217 = sld [smem:[#allocation3 + $0x281]]
    %v218 = vstv %s217
    %v219 = vmul.f32 %v89, %v218
    %v220 = vadd.f32 %v216, %v219
    %s221 = sld [smem:[#allocation3 + $0x282]]
    %v222 = vstv %s221
    %v223 = vmul.f32 %v92, %v222
    %v224 = vadd.f32 %v220, %v223
    %s225 = sld [smem:[#allocation3 + $0x283]]
    %v226 = vstv %s225
    %v227 = vmul.f32 %v95, %v226
    %v228 = vadd.f32 %v224, %v227
    %s229 = sld [smem:[#allocation3 + $0x284]]
    %v230 = vstv %s229
    %v231 = vmul.f32 %v98, %v230
    %v232 = vadd.f32 %v228, %v231
    %s233 = sld [smem:[#allocation5 + $0x5]]
    %v234 = vstv %s233
    %v235 = vadd.f32 %v232, %v234
    %v236 = vmax.f32 %v235, 0.0
    %s237 = sld [smem:[#allocation3 + $0x300]]
    %v238 = vstv %s237
    %v239 = vmul.f32 %v86, %v238
    %s240 = sld [smem:[#allocation3 + $0x301]]
    %v241 = vstv %s240
    %v242 = vmul.f32 %v89, %v241
    %v243 = vadd.f32 %v239, %v242
    %s244 = sld [smem:[#allocation3 + $0x302]]
    %v245 = vstv %s244
    %v246 = vmul.f32 %v92, %v245
    %v247 = vadd.f32 %v243, %v246
    %s248 = sld [smem:[#allocation3 + $0x303]]
    %v249 = vstv %s248
    %v250 = vmul.f32 %v95, %v249
    %v251 = vadd.f32 %v247, %v250
    %s252 = sld [smem:[#allocation3 + $0x304]]
    %v253 = vstv %s252
    %v254 = vmul.f32 %v98, %v253
    %v255 = vadd.f32 %v251, %v254
    %s256 = sld [smem:[#allocation5 + $0x6]]
    %v257 = vstv %s256
    %v258 = vadd.f32 %v255, %v257
    %v259 = vmax.f32 %v258, 0.0
    %s260 = sld [smem:[#allocation3 + $0x380]]
    %v261 = vstv %s260
    %v262 = vmul.f32 %v86, %v261
    %s263 = sld [smem:[#allocation3 + $0x381]]
    %v264 = vstv %s263
    %v265 = vmul.f32 %v89, %v264
    %v266 = vadd.f32 %v262, %v265
    %s267 = sld [smem:[#allocation3 + $0x382]]
    %v268 = vstv %s267
    %v269 = vmul.f32 %v92, %v268
    %v270 = vadd.f32 %v266, %v269
    %s271 = sld [smem:[#allocation3 + $0x383]]
    %v272 = vstv %s271
    %v273 = vmul.f32 %v95, %v272
    %v274 = vadd.f32 %v270, %v273
    %s275 = sld [smem:[#allocation3 + $0x384]]
    %v276 = vstv %s275
    %v277 = vmul.f32 %v98, %v276
    %v278 = vadd.f32 %v274, %v277
    %s279 = sld [smem:[#allocation5 + $0x7]]
    %v280 = vstv %s279
    %v281 = vadd.f32 %v278, %v280
    %v282 = vmax.f32 %v281, 0.0
    %s283 = sld [smem:[#allocation7]]
    %v284 = vstv %s283
    %v285 = vmul.f32 %v121, %v284
    %s286 = sld [smem:[#allocation7 + $0x1]]
    %v287 = vstv %s286
    %v288 = vmul.f32 %v144, %v287
    %v289 = vadd.f32 %v285, %v288
    %s290 = sld [smem:[#allocation7 + $0x2]]
    %v291 = vstv %s290
    %v292 = vmul.f32 %v167, %v291
    %v293 = vadd.f32 %v289, %v292
    %s294 = sld [smem:[#allocation7 + $0x3]]
    %v295 = vstv %s294
    %v296 = vmul.f32 %v190, %v295
    %v297 = vadd.f32 %v293, %v296
    %s298 = sld [smem:[#allocation7 + $0x4]]
    %v299 = vstv %s298
    %v300 = vmul.f32 %v213, %v299
    %v301 = vadd.f32 %v297, %v300
    %s302 = sld [smem:[#allocation7 + $0x5]]
    %v303 = vstv %s302
    %v304 = vmul.f32 %v236, %v303
    %v305 = vadd.f32 %v301, %v304
    %s306 = sld [smem:[#allocation7 + $0x6]]
    %v307 = vstv %s306
    %v308 = vmul.f32 %v259, %v307
    %v309 = vadd.f32 %v305, %v308
    %s310 = sld [smem:[#allocation7 + $0x7]]
    %v311 = vstv %s310
    %v312 = vmul.f32 %v282, %v311
    %v313 = vadd.f32 %v309, %v312
    %s314 = sld [smem:[#allocation8]]
    %v315 = vstv %s314
    %v316 = vadd.f32 %v313, %v315
    %v317 = vmax.f32 %v316, 0.0
    %s318 = sld [smem:[#allocation7 + $0x80]]
    %v319 = vstv %s318
    %v320 = vmul.f32 %v121, %v319
    %s321 = sld [smem:[#allocation7 + $0x81]]
    %v322 = vstv %s321
    %v323 = vmul.f32 %v144, %v322
    %v324 = vadd.f32 %v320, %v323
    %s325 = sld [smem:[#allocation7 + $0x82]]
    %v326 = vstv %s325
    %v327 = vmul.f32 %v167, %v326
    %v328 = vadd.f32 %v324, %v327
    %s329 = sld [smem:[#allocation7 + $0x83]]
    %v330 = vstv %s329
    %v331 = vmul.f32 %v190, %v330
    %v332 = vadd.f32 %v328, %v331
    %s333 = sld [smem:[#allocation7 + $0x84]]
    %v334 = vstv %s333
    %v335 = vmul.f32 %v213, %v334
    %v336 = vadd.f32 %v332, %v335
    %s337 = sld [smem:[#allocation7 + $0x85]]
    %v338 = vstv %s337
    %v339 = vmul.f32 %v236, %v338
    %v340 = vadd.f32 %v336, %v339
    %s341 = sld [smem:[#allocation7 + $0x86]]
    %v342 = vstv %s341
    %v343 = vmul.f32 %v259, %v342
    %v344 = vadd.f32 %v340, %v343
    %s345 = sld [smem:[#allocation7 + $0x87]]
    %v346 = vstv %s345
    %v347 = vmul.f32 %v282, %v346
    %v348 = vadd.f32 %v344, %v347
    %s349 = sld [smem:[#allocation8 + $0x1]]
    %v350 = vstv %s349
    %v351 = vadd.f32 %v348, %v350
    %v352 = vmax.f32 %v351, 0.0
    %s353 = sld [smem:[#allocation7 + $0x100]]
    %v354 = vstv %s353
    %v355 = vmul.f32 %v121, %v354
    %s356 = sld [smem:[#allocation7 + $0x101]]
    %v357 = vstv %s356
    %v358 = vmul.f32 %v144, %v357
    %v359 = vadd.f32 %v355, %v358
    %s360 = sld [smem:[#allocation7 + $0x102]]
    %v361 = vstv %s360
    %v362 = vmul.f32 %v167, %v361
    %v363 = vadd.f32 %v359, %v362
    %s364 = sld [smem:[#allocation7 + $0x103]]
    %v365 = vstv %s364
    %v366 = vmul.f32 %v190, %v365
    %v367 = vadd.f32 %v363, %v366
    %s368 = sld [smem:[#allocation7 + $0x104]]
    %v369 = vstv %s368
    %v370 = vmul.f32 %v213, %v369
    %v371 = vadd.f32 %v367, %v370
    %s372 = sld [smem:[#allocation7 + $0x105]]
    %v373 = vstv %s372
    %v374 = vmul.f32 %v236, %v373
    %v375 = vadd.f32 %v371, %v374
    %s376 = sld [smem:[#allocation7 + $0x106]]
    %v377 = vstv %s376
    %v378 = vmul.f32 %v259, %v377
    %v379 = vadd.f32 %v375, %v378
    %s380 = sld [smem:[#allocation7 + $0x107]]
    %v381 = vstv %s380
    %v382 = vmul.f32 %v282, %v381
    %v383 = vadd.f32 %v379, %v382
    %s384 = sld [smem:[#allocation8 + $0x2]]
    %v385 = vstv %s384
    %v386 = vadd.f32 %v383, %v385
    %v387 = vmax.f32 %v386, 0.0
    %s388 = sld [smem:[#allocation7 + $0x180]]
    %v389 = vstv %s388
    %v390 = vmul.f32 %v121, %v389
    %s391 = sld [smem:[#allocation7 + $0x181]]
    %v392 = vstv %s391
    %v393 = vmul.f32 %v144, %v392
    %v394 = vadd.f32 %v390, %v393
    %s395 = sld [smem:[#allocation7 + $0x182]]
    %v396 = vstv %s395
    %v397 = vmul.f32 %v167, %v396
    %v398 = vadd.f32 %v394, %v397
    %s399 = sld [smem:[#allocation7 + $0x183]]
    %v400 = vstv %s399
    %v401 = vmul.f32 %v190, %v400
    %v402 = vadd.f32 %v398, %v401
    %s403 = sld [smem:[#allocation7 + $0x184]]
    %v404 = vstv %s403
    %v405 = vmul.f32 %v213, %v404
    %v406 = vadd.f32 %v402, %v405
    %s407 = sld [smem:[#allocation7 + $0x185]]
    %v408 = vstv %s407
    %v409 = vmul.f32 %v236, %v408
    %v410 = vadd.f32 %v406, %v409
    %s411 = sld [smem:[#allocation7 + $0x186]]
    %v412 = vstv %s411
    %v413 = vmul.f32 %v259, %v412
    %v414 = vadd.f32 %v410, %v413
    %s415 = sld [smem:[#allocation7 + $0x187]]
    %v416 = vstv %s415
    %v417 = vmul.f32 %v282, %v416
    %v418 = vadd.f32 %v414, %v417
    %s419 = sld [smem:[#allocation8 + $0x3]]
    %v420 = vstv %s419
    %v421 = vadd.f32 %v418, %v420
    %v422 = vmax.f32 %v421, 0.0
    %s423 = sld [smem:[#allocation7 + $0x200]]
    %v424 = vstv %s423
    %v425 = vmul.f32 %v121, %v424
    %s426 = sld [smem:[#allocation7 + $0x201]]
    %v427 = vstv %s426
    %v428 = vmul.f32 %v144, %v427
    %v429 = vadd.f32 %v425, %v428
    %s430 = sld [smem:[#allocation7 + $0x202]]
    %v431 = vstv %s430
    %v432 = vmul.f32 %v167, %v431
    %v433 = vadd.f32 %v429, %v432
    %s434 = sld [smem:[#allocation7 + $0x203]]
    %v435 = vstv %s434
    %v436 = vmul.f32 %v190, %v435
    %v437 = vadd.f32 %v433, %v436
    %s438 = sld [smem:[#allocation7 + $0x204]]
    %v439 = vstv %s438
    %v440 = vmul.f32 %v213, %v439
    %v441 = vadd.f32 %v437, %v440
    %s442 = sld [smem:[#allocation7 + $0x205]]
    %v443 = vstv %s442
    %v444 = vmul.f32 %v236, %v443
    %v445 = vadd.f32 %v441, %v444
    %s446 = sld [smem:[#allocation7 + $0x206]]
    %v447 = vstv %s446
    %v448 = vmul.f32 %v259, %v447
    %v449 = vadd.f32 %v445, %v448
    %s450 = sld [smem:[#allocation7 + $0x207]]
    %v451 = vstv %s450
    %v452 = vmul.f32 %v282, %v451
    %v453 = vadd.f32 %v449, %v452
    %s454 = sld [smem:[#allocation8 + $0x4]]
    %v455 = vstv %s454
    %v456 = vadd.f32 %v453, %v455
    %v457 = vmax.f32 %v456, 0.0
    %s458 = sld [smem:[#allocation7 + $0x280]]
    %v459 = vstv %s458
    %v460 = vmul.f32 %v121, %v459
    %s461 = sld [smem:[#allocation7 + $0x281]]
    %v462 = vstv %s461
    %v463 = vmul.f32 %v144, %v462
    %v464 = vadd.f32 %v460, %v463
    %s465 = sld [smem:[#allocation7 + $0x282]]
    %v466 = vstv %s465
    %v467 = vmul.f32 %v167, %v466
    %v468 = vadd.f32 %v464, %v467
    %s469 = sld [smem:[#allocation7 + $0x283]]
    %v470 = vstv %s469
    %v471 = vmul.f32 %v190, %v470
    %v472 = vadd.f32 %v468, %v471
    %s473 = sld [smem:[#allocation7 + $0x284]]
    %v474 = vstv %s473
    %v475 = vmul.f32 %v213, %v474
    %v476 = vadd.f32 %v472, %v475
    %s477 = sld [smem:[#allocation7 + $0x285]]
    %v478 = vstv %s477
    %v479 = vmul.f32 %v236, %v478
    %v480 = vadd.f32 %v476, %v479
    %s481 = sld [smem:[#allocation7 + $0x286]]
    %v482 = vstv %s481
    %v483 = vmul.f32 %v259, %v482
    %v484 = vadd.f32 %v480, %v483
    %s485 = sld [smem:[#allocation7 + $0x287]]
    %v486 = vstv %s485
    %v487 = vmul.f32 %v282, %v486
    %v488 = vadd.f32 %v484, %v487
    %s489 = sld [smem:[#allocation8 + $0x5]]
    %v490 = vstv %s489
    %v491 = vadd.f32 %v488, %v490
    %v492 = vmax.f32 %v491, 0.0
    %s493 = sld [smem:[#allocation7 + $0x300]]
    %v494 = vstv %s493
    %v495 = vmul.f32 %v121, %v494
    %s496 = sld [smem:[#allocation7 + $0x301]]
    %v497 = vstv %s496
    %v498 = vmul.f32 %v144, %v497
    %v499 = vadd.f32 %v495, %v498
    %s500 = sld [smem:[#allocation7 + $0x302]]
    %v501 = vstv %s500
    %v502 = vmul.f32 %v167, %v501
    %v503 = vadd.f32 %v499, %v502
    %s504 = sld [smem:[#allocation7 + $0x303]]
    %v505 = vstv %s504
    %v506 = vmul.f32 %v190, %v505
    %v507 = vadd.f32 %v503, %v506
    %s508 = sld [smem:[#allocation7 + $0x304]]
    %v509 = vstv %s508
    %v510 = vmul.f32 %v213, %v509
    %v511 = vadd.f32 %v507, %v510
    %s512 = sld [smem:[#allocation7 + $0x305]]
    %v513 = vstv %s512
    %v514 = vmul.f32 %v236, %v513
    %v515 = vadd.f32 %v511, %v514
    %s516 = sld [smem:[#allocation7 + $0x306]]
    %v517 = vstv %s516
    %v518 = vmul.f32 %v259, %v517
    %v519 = vadd.f32 %v515, %v518
    %s520 = sld [smem:[#allocation7 + $0x307]]
    %v521 = vstv %s520
    %v522 = vmul.f32 %v282, %v521
    %v523 = vadd.f32 %v519, %v522
    %s524 = sld [smem:[#allocation8 + $0x6]]
    %v525 = vstv %s524
    %v526 = vadd.f32 %v523, %v525
    %v527 = vmax.f32 %v526, 0.0
    %s528 = sld [smem:[#allocation7 + $0x380]]
    %v529 = vstv %s528
    %v530 = vmul.f32 %v121, %v529
    %s531 = sld [smem:[#allocation7 + $0x381]]
    %v532 = vstv %s531
    %v533 = vmul.f32 %v144, %v532
    %v534 = vadd.f32 %v530, %v533
    %s535 = sld [smem:[#allocation7 + $0x382]]
    %v536 = vstv %s535
    %v537 = vmul.f32 %v167, %v536
    %v538 = vadd.f32 %v534, %v537
    %s539 = sld [smem:[#allocation7 + $0x383]]
    %v540 = vstv %s539
    %v541 = vmul.f32 %v190, %v540
    %v542 = vadd.f32 %v538, %v541
    %s543 = sld [smem:[#allocation7 + $0x384]]
    %v544 = vstv %s543
    %v545 = vmul.f32 %v213, %v544
    %v546 = vadd.f32 %v542, %v545
    %s547 = sld [smem:[#allocation7 + $0x385]]
    %v548 = vstv %s547
    %v549 = vmul.f32 %v236, %v548
    %v550 = vadd.f32 %v546, %v549
    %s551 = sld [smem:[#allocation7 + $0x386]]
    %v552 = vstv %s551
    %v553 = vmul.f32 %v259, %v552
    %v554 = vadd.f32 %v550, %v553
    %s555 = sld [smem:[#allocation7 + $0x387]]
    %v556 = vstv %s555
    %v557 = vmul.f32 %v282, %v556
    %v558 = vadd.f32 %v554, %v557
    %s559 = sld [smem:[#allocation8 + $0x7]]
    %v560 = vstv %s559
    %v561 = vadd.f32 %v558, %v560
    %v562 = vmax.f32 %v561, 0.0
    %s563 = sld [smem:[#allocation10]]
    %v564 = vstv %s563
    %v565 = vmul.f32 %v317, %v564
    %s566 = sld [smem:[#allocation10 + $0x1]]
    %v567 = vstv %s566
    %v568 = vmul.f32 %v352, %v567
    %v569 = vadd.f32 %v565, %v568
    %s570 = sld [smem:[#allocation10 + $0x2]]
    %v571 = vstv %s570
    %v572 = vmul.f32 %v387, %v571
    %v573 = vadd.f32 %v569, %v572
    %s574 = sld [smem:[#allocation10 + $0x3]]
    %v575 = vstv %s574
    %v576 = vmul.f32 %v422, %v575
    %v577 = vadd.f32 %v573, %v576
    %s578 = sld [smem:[#allocation10 + $0x4]]
    %v579 = vstv %s578
    %v580 = vmul.f32 %v457, %v579
    %v581 = vadd.f32 %v577, %v580
    %s582 = sld [smem:[#allocation10 + $0x5]]
    %v583 = vstv %s582
    %v584 = vmul.f32 %v492, %v583
    %v585 = vadd.f32 %v581, %v584
    %s586 = sld [smem:[#allocation10 + $0x6]]
    %v587 = vstv %s586
    %v588 = vmul.f32 %v527, %v587
    %v589 = vadd.f32 %v585, %v588
    %s590 = sld [smem:[#allocation10 + $0x7]]
    %v591 = vstv %s590
    %v592 = vmul.f32 %v562, %v591
    %v593 = vadd.f32 %v589, %v592
    %s594 = sld [smem:[#allocation2]]
    %v595 = vstv %s594
    %v596 = vadd.f32 %v593, %v595
    %v597 = vsub.f32 0.0, %v596
    %v598 = vmul.f32 %v597, 1.442695
    %v599 = vpow.pop %v598
    %v600 = vadd.f32 %v599, 1.0
    %v601 = vrcp.pop %v600
    %602 = vst [vmem:[%s7] sm:$0xff] %v601
    // Predicated region
    $region50: #{ai_forward_feature_major.1} parent=1 // pred_check
      _
    $region51: #{ai_forward_feature_major.1} parent=1 // pred_check_branch
      %604 = sbr.rel (0) target = $region53
    $region52: #{ai_forward_feature_major.1} parent=1 // pred_region
      _
    $region53: #{ai_forward_feature_major.1} parent=1 // pred_fallthru
      _
    // Predicated region
    $region54: #{ai_forward_feature_major.1} parent=1 // pred_check
      _
    $region55: #{ai_forward_feature_major.1} parent=1 // pred_check_branch
      %606 = sbr.rel (0) target = $region57
    $region56: #{ai_forward_feature_major.1} parent=1 // pred_region
      _
    $region57: #{ai_forward_feature_major.1} parent=1 // pred_fallthru
      _
    %607 = vsyncpa [#allocation4], 1
    %608 = vsyncpa [#allocation6], 1
    %609 = vsyncpa [#allocation9], 1

</llo_original>
